<compile_context>
chip_gen: v6e
topology: v6e:2x2x1
jax: 0.10.0
libtpu: 0.0.40
codegen_flags: <defaults>
</compile_context>

<pallas_src>
import jax
import jax.numpy as jnp
from jax.experimental import pallas as pl
from jax.experimental.pallas import tpu as pltpu


def _ceil_to(v, m):
    return (v + m - 1) // m * m


def fca_kernel(x_ref, w1_ref, b1_ref, dw1_ref, b2_ref, dw2_ref, b3_ref,
               out_ref, wpad_ref):
    """One batch element per grid step (NHWC, channel dim lane-padded to Cpad).

    x_ref    : (1, H, W, Cin)   bf16 input tile
    w1_ref   : (Cin, Cpad)      f32, = 0.25 * conv1x1_weight * BN1_scale (Cout zero-padded)
    b1_ref   : (1, Cpad)        f32 BN1 bias
    dw1_ref  : (5, Cpad)        f32 depthwise (1,5) taps * BN2_scale
    b2_ref   : (1, Cpad)        f32 BN2 bias
    dw2_ref  : (5, Cpad)        f32 depthwise (5,1) taps * BN3_scale
    b3_ref   : (1, Cpad)        f32 BN3 bias
    out_ref  : (1, H, W, Cpad)  bf16 output tile (lane-dense store)
    wpad_ref : (Hp, W+8, Cpad)  f32 VMEM scratch, 4-wide zero borders along W
    """
    H = x_ref.shape[1]
    W = x_ref.shape[2]
    Cin = x_ref.shape[3]
    Hp = H // 2
    Cpad = out_ref.shape[3]
    f32 = jnp.float32

    # Zero only the thin W borders of the scratch (interiors are fully rewritten each
    # step).  Not gated on program_id()==0: with a "parallel" batch axis each core owns
    # its own scratch instance and only one core ever executes step 0.
    wpad_ref[:, 0:4, :] = jnp.zeros((Hp, 4, Cpad), f32)
    wpad_ref[:, W + 4:W + 8, :] = jnp.zeros((Hp, 4, Cpad), f32)

    # ---- AvgPool along H: pair-sum over rows (leading-dim reshape is free), f32 sums ----
    xr = x_ref[0].reshape(Hp, 2, W, Cin)
    xh = xr[:, 0].astype(f32) + xr[:, 1].astype(f32)            # (Hp, W, Cin)

    # ---- Conv2d 1x1 (avg-pool /4 and BN1 scale folded into w1) as one matmul ----
    # (For tiny Cin a VPU broadcast-FMA would also work; the MXU sits off the critical
    #  VPU/vst path here, so the proven matmul form is kept.  For real Cin (48..480)
    #  the contraction dim should be padded to a 128-multiple as well.)
    y = jnp.dot(xh.reshape(Hp * W, Cin), w1_ref[...],
                preferred_element_type=f32).reshape(Hp, W, Cpad)

    # ---- AvgPool along W, kept W-replicated: z[.., w] == pooled value at w//2 ----
    wpad_ref[:, 4:4 + W, :] = y                                  # single interior store
    left = wpad_ref[:, 3:3 + W, :]                               # y[w-1]  (0 at w==0)
    right = wpad_ref[:, 5:5 + W, :]                              # y[w+1]  (0 at w==W-1)
    w_idx = jax.lax.broadcasted_iota(jnp.int32, (Hp, W, Cpad), 1)
    z = y + jnp.where((w_idx & 1) == 0, right, left) + b1_ref[0]  # == BN1 out, W-replicated

    # ---- depthwise Conv2d (1,5), pad (0,2), groups=C + BN2 : register accumulation ----
    # On the replicated array the pooled-grid taps become even shifts along W, read from
    # the zero-padded scratch; the running sum lives in vregs and is never stored back.
    wpad_ref[:, 4:4 + W, :] = z
    t = z * dw1_ref[2] + b2_ref[0]                               # center tap (registers)
    t = t + wpad_ref[:, 0:W, :] * dw1_ref[0]                     # pooled offset -2
    t = t + wpad_ref[:, 2:2 + W, :] * dw1_ref[1]                 # pooled offset -1
    t = t + wpad_ref[:, 6:6 + W, :] * dw1_ref[3]                 # pooled offset +1
    t = t + wpad_ref[:, 8:8 + W, :] * dw1_ref[4]                 # pooled offset +2

    # ---- depthwise Conv2d (5,1), pad (2,0), groups=C + BN3 : fully in registers ----
    # Shifts along pooled H are leading-dim slices of a zero-concatenated value (free),
    # so no second scratch buffer and no extra VMEM traffic at all.
    zpad = jnp.zeros((2, W, Cpad), f32)
    tp = jnp.concatenate([zpad, t, zpad], axis=0)                # (Hp + 4, W, Cpad)
    u = tp[0:Hp] * dw2_ref[0] + b3_ref[0]
    for k in range(1, 5):
        u = u + tp[k:k + Hp] * dw2_ref[k]
    # TODO(synk): at real channel counts (Cpad ~ 512) chunk t/u over ~8 pooled rows so the
    # register accumulation stays within the vreg file instead of spilling.

    # ---- Sigmoid (EUP exp + approx reciprocal; ~1e-3 rel err on attention weights) ----
    a = pl.reciprocal(1.0 + jnp.exp(-u), approx=True)            # (Hp, W, Cpad), W already x2

    # ---- nearest x2 along H (W is already replicated): one lane-dense store ----
    a2 = jnp.broadcast_to(a[:, None, :, :], (Hp, 2, W, Cpad)).reshape(H, W, Cpad)
    out_ref[0] = a2.astype(out_ref.dtype)


def fca_forward(x_nhwc, params, cout):
    """FCA forward: x (N, H, W, Cin) NHWC -> attention map (N, H, W, cout) bf16."""
    w1s, b1, dw1s, b2, dw2s, b3 = params
    N, H, W, Cin = x_nhwc.shape
    assert H % 2 == 0 and W % 2 == 0, "FCA assumes even spatial dims (AvgPool2d(2,2))"
    assert W % 8 == 0, "W must be a multiple of 8 (sublane tiling)"
    Hp = H // 2
    Cpad = w1s.shape[1]

    x = x_nhwc.astype(jnp.bfloat16)

    grid_spec = pltpu.PrefetchScalarGridSpec(
        num_scalar_prefetch=0,
        grid=(N,),
        in_specs=[
            pl.BlockSpec((1, H, W, Cin), lambda n: (n, 0, 0, 0)),
            pl.BlockSpec((Cin, Cpad), lambda n: (0, 0)),   # w1 (pool + BN1 scale folded)
            pl.BlockSpec((1, Cpad), lambda n: (0, 0)),     # BN1 bias
            pl.BlockSpec((5, Cpad), lambda n: (0, 0)),     # (1,5) taps * BN2 scale
            pl.BlockSpec((1, Cpad), lambda n: (0, 0)),     # BN2 bias
            pl.BlockSpec((5, Cpad), lambda n: (0, 0)),     # (5,1) taps * BN3 scale
            pl.BlockSpec((1, Cpad), lambda n: (0, 0)),     # BN3 bias
        ],
        out_specs=pl.BlockSpec((1, H, W, Cpad), lambda n: (n, 0, 0, 0)),
        scratch_shapes=[pltpu.VMEM((Hp, W + 8, Cpad), jnp.float32)],
    )
    # TODO(synk): for large images add a second, parallel grid axis tiling H (with a
    # 2-pooled-row halo for the (5,1) conv) so per-step VMEM stays within v7x's 64 MiB.

    # Explicit VMEM budget: double-buffered in/out blocks + scratch + slack.
    in_blk = H * _ceil_to(W, 8) * _ceil_to(Cin, 128) * 2           # bf16, lane/sublane padded
    out_blk = H * _ceil_to(W, 8) * Cpad * 2                        # bf16
    scratch = Hp * _ceil_to(W + 8, 8) * Cpad * 4                   # f32
    vmem_limit = int(min(2 * (in_blk + out_blk) + scratch + (4 << 20), 64 << 20))

    out = pl.pallas_call(
        fca_kernel,
        out_shape=jax.ShapeDtypeStruct((N, H, W, Cpad), jnp.bfloat16),
        grid_spec=grid_spec,
        compiler_params=pltpu.CompilerParams(
            dimension_semantics=("parallel",),      # independent batch elements (megacore)
            vmem_limit_bytes=vmem_limit),
    )(x, w1s, b1, dw1s, b2, dw2s, b3)

    # Drop the zero-padded channels (they come out as sigmoid(0) = 0.5).  In a full
    # network the consumer would simply keep the lane-padded channel layout.
    return out[..., :cout]


def make_params(key, inp, oup, cpad):
    """Deterministic synthetic parameters; eval-mode BN folded into the conv weights and
    the channel dim zero-padded to `cpad` for lane-dense kernel stores."""
    eps = 1e-5
    ks = jax.random.split(key, 6)
    w1 = jax.random.normal(ks[0], (inp, oup), jnp.float32) * 0.3     # Conv1x1 (in, out)
    dw1 = jax.random.normal(ks[1], (5, oup), jnp.float32) * 0.3      # (1,5) depthwise taps
    dw2 = jax.random.normal(ks[2], (5, oup), jnp.float32) * 0.3      # (5,1) depthwise taps

    def bn(k):
        kg, kb, km, kv = jax.random.split(k, 4)
        gamma = 1.0 + 0.3 * jax.random.normal(kg, (oup,), jnp.float32)
        beta = 0.1 * jax.random.normal(kb, (oup,), jnp.float32)
        mean = 0.1 * jax.random.normal(km, (oup,), jnp.float32)
        var = 0.5 + jax.random.uniform(kv, (oup,), jnp.float32)
        scale = gamma / jnp.sqrt(var + eps)
        bias = beta - mean * scale
        return scale, bias

    s1, b1 = bn(ks[3])
    s2, b2 = bn(ks[4])
    s3, b3 = bn(ks[5])

    def padc(a):  # zero-pad the trailing (channel) dim to cpad
        return jnp.pad(a, [(0, 0)] * (a.ndim - 1) + [(0, cpad - oup)])

    # Fold the avg-pool 1/4 and the BN scales into the conv weights (exact, eval-mode BN).
    params_kernel = (
        padc(0.25 * w1 * s1[None, :]),           # (Cin, Cpad) f32
        padc(b1.reshape(1, oup)),                # (1, Cpad)
        padc(dw1 * s2[None, :]),                 # (5, Cpad)
        padc(b2.reshape(1, oup)),                # (1, Cpad)
        padc(dw2 * s3[None, :]),                 # (5, Cpad)
        padc(b3.reshape(1, oup)),                # (1, Cpad)
    )
    params_ref = (w1, s1, b1, dw1, s2, b2, dw2, s3, b3)
    return params_kernel, params_ref


def fca_reference(x_nhwc, params_ref):
    """Pure-JAX NHWC reference mirroring the PyTorch forward (eval-mode BN, f32)."""
    w1, s1, b1, dw1, s2, b2, dw2, s3, b3 = params_ref
    x = x_nhwc.astype(jnp.float32)
    N, H, W, Ci = x.shape
    Hp, Wp = H // 2, W // 2
    p = x.reshape(N, Hp, 2, Wp, 2, Ci).mean(axis=(2, 4))                  # AvgPool2d(2,2)
    z = jnp.einsum('nhwi,io->nhwo', p, w1) * s1 + b1                      # Conv1x1 + BN1
    zp = jnp.pad(z, ((0, 0), (0, 0), (2, 2), (0, 0)))
    t = sum(zp[:, :, k:k + Wp, :] * dw1[k] for k in range(5)) * s2 + b2   # (1,5) dw + BN2
    tp = jnp.pad(t, ((0, 0), (2, 2), (0, 0), (0, 0)))
    u = sum(tp[:, k:k + Hp, :, :] * dw2[k] for k in range(5)) * s3 + b3   # (5,1) dw + BN3
    a = jax.nn.sigmoid(u)
    return jnp.repeat(jnp.repeat(a, 2, axis=1), 2, axis=2)                # nearest x2


if __name__ == "__main__":
    N, Cin, Cout, H, W = 2, 4, 8, 16, 16
    Cpad = _ceil_to(Cout, 128)                  # lane-dense padded channel count
    key = jax.random.PRNGKey(0)
    kx, kp = jax.random.split(key)
    # NHWC + small magnitudes at the model boundary; the kernel takes bf16 internally.
    x = jax.random.normal(kx, (N, H, W, Cin), jnp.float32)
    params_kernel, params_ref = make_params(kp, Cin, Cout, Cpad)

    fca = jax.jit(fca_forward, static_argnums=(2,))
    out = jax.block_until_ready(fca(x, params_kernel, Cout))
    ref = jax.block_until_ready(fca_reference(x, params_ref))

    assert out.shape == (N, H, W, Cout), out.shape
    out_f32 = out.astype(jnp.float32)
    err = float(jnp.max(jnp.abs(out_f32 - ref)))
    # bf16 input/output + approx reciprocal in the sigmoid -> slightly loose tolerance.
    assert jnp.allclose(out_f32, ref, atol=2e-2, rtol=2e-2), err
    print("KERNEL_OK")
</pallas_src>

<mosaic_0001>
module attributes {stable_mosaic.version = 11 : i64} {
  func.func @fca_kernel(%arg0: i32, %arg1: memref<1x16x16x4xbf16, #tpu.memory_space<vmem>>, %arg2: memref<4x128xf32, #tpu.memory_space<vmem>>, %arg3: memref<1x128xf32, #tpu.memory_space<vmem>>, %arg4: memref<5x128xf32, #tpu.memory_space<vmem>>, %arg5: memref<1x128xf32, #tpu.memory_space<vmem>>, %arg6: memref<5x128xf32, #tpu.memory_space<vmem>>, %arg7: memref<1x128xf32, #tpu.memory_space<vmem>>, %arg8: memref<1x16x16x128xbf16, #tpu.memory_space<vmem>>, %arg9: memref<8x24x128xf32, #tpu.memory_space<vmem>>) attributes {dimension_semantics = [#tpu.dimension_semantics<parallel>], iteration_bounds = array<i64: 2>, scalar_prefetch = 0 : i64, scratch_operands = 1 : i64, tpu.core_type = #tpu.core_type<tc>, window_params = [{transform_indices = @transform_0, window_bounds = array<i64: 1, 16, 16, 4>}, {pipeline_mode = #tpu.pipeline_mode<synchronous>, transform_indices = @transform_1, window_bounds = array<i64: 4, 128>}, {pipeline_mode = #tpu.pipeline_mode<synchronous>, transform_indices = @transform_2, window_bounds = array<i64: 1, 128>}, {pipeline_mode = #tpu.pipeline_mode<synchronous>, transform_indices = @transform_3, window_bounds = array<i64: 5, 128>}, {pipeline_mode = #tpu.pipeline_mode<synchronous>, transform_indices = @transform_4, window_bounds = array<i64: 1, 128>}, {pipeline_mode = #tpu.pipeline_mode<synchronous>, transform_indices = @transform_5, window_bounds = array<i64: 5, 128>}, {pipeline_mode = #tpu.pipeline_mode<synchronous>, transform_indices = @transform_6, window_bounds = array<i64: 1, 128>}, {transform_indices = @transform_7, window_bounds = array<i64: 1, 16, 16, 128>}]} {
    %cst = arith.constant 0.000000e+00 : f32
    %0 = vector.broadcast %cst : f32 to vector<8x4x128xf32>
    %c0 = arith.constant 0 : index
    %c0_0 = arith.constant 0 : index
    %c0_1 = arith.constant 0 : index
    %1 = vector.load %arg9[%c0, %c0_0, %c0_1] : memref<8x24x128xf32, #tpu.memory_space<vmem>>, vector<8x4x128xf32>
    tpu.vector_store %arg9[%c0, %c0_0, %c0_1], %0 {strides = array<i32>} : memref<8x24x128xf32, #tpu.memory_space<vmem>>, vector<8x4x128xf32>,
    %cst_2 = arith.constant 0.000000e+00 : f32
    %2 = vector.broadcast %cst_2 : f32 to vector<8x4x128xf32>
    %c0_3 = arith.constant 0 : index
    %c20 = arith.constant 20 : index
    %c0_4 = arith.constant 0 : index
    %3 = vector.load %arg9[%c0_3, %c20, %c0_4] : memref<8x24x128xf32, #tpu.memory_space<vmem>>, vector<8x4x128xf32>
    tpu.vector_store %arg9[%c0_3, %c20, %c0_4], %2 {strides = array<i32>} : memref<8x24x128xf32, #tpu.memory_space<vmem>>, vector<8x4x128xf32>,
    %c0_5 = arith.constant 0 : index
    %c0_6 = arith.constant 0 : index
    %c0_7 = arith.constant 0 : index
    %c0_8 = arith.constant 0 : index
    %4 = vector.load %arg1[%c0_5, %c0_6, %c0_7, %c0_8] : memref<1x16x16x4xbf16, #tpu.memory_space<vmem>>, vector<1x16x16x4xbf16>
    %5 = vector.shape_cast %4 : vector<1x16x16x4xbf16> to vector<16x16x4xbf16>
    %6 = vector.shape_cast %5 : vector<16x16x4xbf16> to vector<8x2x16x4xbf16>
    %7 = vector.extract_strided_slice %6 {offsets = [0, 0, 0, 0], sizes = [8, 1, 16, 4], strides = [1, 1, 1, 1]} : vector<8x2x16x4xbf16> to vector<8x1x16x4xbf16>
    %8 = vector.shape_cast %7 : vector<8x1x16x4xbf16> to vector<8x16x4xbf16>
    %9 = arith.extf %8 : vector<8x16x4xbf16> to vector<8x16x4xf32>
    %10 = vector.extract_strided_slice %6 {offsets = [0, 1, 0, 0], sizes = [8, 1, 16, 4], strides = [1, 1, 1, 1]} : vector<8x2x16x4xbf16> to vector<8x1x16x4xbf16>
    %11 = vector.shape_cast %10 : vector<8x1x16x4xbf16> to vector<8x16x4xbf16>
    %12 = arith.extf %11 : vector<8x16x4xbf16> to vector<8x16x4xf32>
    %13 = arith.addf %9, %12 : vector<8x16x4xf32>
    %14 = vector.shape_cast %13 : vector<8x16x4xf32> to vector<128x4xf32>
    %c0_9 = arith.constant 0 : index
    %c0_10 = arith.constant 0 : index
    %15 = vector.load %arg2[%c0_9, %c0_10] : memref<4x128xf32, #tpu.memory_space<vmem>>, vector<4x128xf32>
    %cst_11 = arith.constant dense<0.000000e+00> : vector<128x128xf32>
    %16 = tpu.matmul %14, %15, %cst_11 {dimension_numbers = #tpu.dot_dimension_numbers<[1], [0], [0], [1], [0, 0, 1, 1], [], []>} : vector<128x4xf32>, vector<4x128xf32>, vector<128x128xf32> -> vector<128x128xf32>
    %17 = vector.shape_cast %16 : vector<128x128xf32> to vector<8x16x128xf32>
    %c0_12 = arith.constant 0 : index
    %c4 = arith.constant 4 : index
    %c0_13 = arith.constant 0 : index
    %18 = vector.load %arg9[%c0_12, %c4, %c0_13] : memref<8x24x128xf32, #tpu.memory_space<vmem>>, vector<8x16x128xf32>
    tpu.vector_store %arg9[%c0_12, %c4, %c0_13], %17 {strides = array<i32>} : memref<8x24x128xf32, #tpu.memory_space<vmem>>, vector<8x16x128xf32>,
    %c0_14 = arith.constant 0 : index
    %c3 = arith.constant 3 : index
    %c0_15 = arith.constant 0 : index
    %19 = vector.load %arg9[%c0_14, %c3, %c0_15] : memref<8x24x128xf32, #tpu.memory_space<vmem>>, vector<8x16x128xf32>
    %c0_16 = arith.constant 0 : index
    %c5 = arith.constant 5 : index
    %c0_17 = arith.constant 0 : index
    %20 = vector.load %arg9[%c0_16, %c5, %c0_17] : memref<8x24x128xf32, #tpu.memory_space<vmem>>, vector<8x16x128xf32>
    %21 = tpu.iota {dimensions = array<i32: 1>} : vector<8x16x128xi32>
    %c1_i32 = arith.constant 1 : i32
    %22 = vector.broadcast %c1_i32 : i32 to vector<8x16x128xi32>
    %23 = arith.andi %21, %22 : vector<8x16x128xi32>
    %c0_i32 = arith.constant 0 : i32
    %24 = vector.broadcast %c0_i32 : i32 to vector<8x16x128xi32>
    %25 = arith.cmpi eq, %23, %24 : vector<8x16x128xi32>
    %26 = arith.select %25, %20, %19 : vector<8x16x128xi1>, vector<8x16x128xf32>
    %27 = arith.addf %17, %26 : vector<8x16x128xf32>
    %c0_18 = arith.constant 0 : index
    %c0_19 = arith.constant 0 : index
    %28 = vector.load %arg3[%c0_18, %c0_19] : memref<1x128xf32, #tpu.memory_space<vmem>>, vector<1x128xf32>
    %29 = vector.shape_cast %28 : vector<1x128xf32> to vector<128xf32>
    %30 = vector.shape_cast %29 : vector<128xf32> to vector<1x1x128xf32>
    %31 = vector.broadcast %30 : vector<1x1x128xf32> to vector<8x16x128xf32>
    %32 = arith.addf %27, %31 : vector<8x16x128xf32>
    %c0_20 = arith.constant 0 : index
    %c4_21 = arith.constant 4 : index
    %c0_22 = arith.constant 0 : index
    %33 = vector.load %arg9[%c0_20, %c4_21, %c0_22] : memref<8x24x128xf32, #tpu.memory_space<vmem>>, vector<8x16x128xf32>
    tpu.vector_store %arg9[%c0_20, %c4_21, %c0_22], %32 {strides = array<i32>} : memref<8x24x128xf32, #tpu.memory_space<vmem>>, vector<8x16x128xf32>,
    %c2 = arith.constant 2 : index
    %c0_23 = arith.constant 0 : index
    %34 = vector.load %arg4[%c2, %c0_23] : memref<5x128xf32, #tpu.memory_space<vmem>>, vector<1x128xf32>
    %35 = vector.shape_cast %34 : vector<1x128xf32> to vector<128xf32>
    %36 = vector.shape_cast %35 : vector<128xf32> to vector<1x1x128xf32>
    %37 = vector.broadcast %36 : vector<1x1x128xf32> to vector<8x16x128xf32>
    %38 = arith.mulf %32, %37 : vector<8x16x128xf32>
    %c0_24 = arith.constant 0 : index
    %c0_25 = arith.constant 0 : index
    %39 = vector.load %arg5[%c0_24, %c0_25] : memref<1x128xf32, #tpu.memory_space<vmem>>, vector<1x128xf32>
    %40 = vector.shape_cast %39 : vector<1x128xf32> to vector<128xf32>
    %41 = vector.shape_cast %40 : vector<128xf32> to vector<1x1x128xf32>
    %42 = vector.broadcast %41 : vector<1x1x128xf32> to vector<8x16x128xf32>
    %43 = arith.addf %38, %42 : vector<8x16x128xf32>
    %c0_26 = arith.constant 0 : index
    %c0_27 = arith.constant 0 : index
    %c0_28 = arith.constant 0 : index
    %44 = vector.load %arg9[%c0_26, %c0_27, %c0_28] : memref<8x24x128xf32, #tpu.memory_space<vmem>>, vector<8x16x128xf32>
    %c0_29 = arith.constant 0 : index
    %c0_30 = arith.constant 0 : index
    %45 = vector.load %arg4[%c0_29, %c0_30] : memref<5x128xf32, #tpu.memory_space<vmem>>, vector<1x128xf32>
    %46 = vector.shape_cast %45 : vector<1x128xf32> to vector<128xf32>
    %47 = vector.shape_cast %46 : vector<128xf32> to vector<1x1x128xf32>
    %48 = vector.broadcast %47 : vector<1x1x128xf32> to vector<8x16x128xf32>
    %49 = arith.mulf %44, %48 : vector<8x16x128xf32>
    %50 = arith.addf %43, %49 : vector<8x16x128xf32>
    %c0_31 = arith.constant 0 : index
    %c2_32 = arith.constant 2 : index
    %c0_33 = arith.constant 0 : index
    %51 = vector.load %arg9[%c0_31, %c2_32, %c0_33] : memref<8x24x128xf32, #tpu.memory_space<vmem>>, vector<8x16x128xf32>
    %c1 = arith.constant 1 : index
    %c0_34 = arith.constant 0 : index
    %52 = vector.load %arg4[%c1, %c0_34] : memref<5x128xf32, #tpu.memory_space<vmem>>, vector<1x128xf32>
    %53 = vector.shape_cast %52 : vector<1x128xf32> to vector<128xf32>
    %54 = vector.shape_cast %53 : vector<128xf32> to vector<1x1x128xf32>
    %55 = vector.broadcast %54 : vector<1x1x128xf32> to vector<8x16x128xf32>
    %56 = arith.mulf %51, %55 : vector<8x16x128xf32>
    %57 = arith.addf %50, %56 : vector<8x16x128xf32>
    %c0_35 = arith.constant 0 : index
    %c6 = arith.constant 6 : index
    %c0_36 = arith.constant 0 : index
    %58 = vector.load %arg9[%c0_35, %c6, %c0_36] : memref<8x24x128xf32, #tpu.memory_space<vmem>>, vector<8x16x128xf32>
    %c3_37 = arith.constant 3 : index
    %c0_38 = arith.constant 0 : index
    %59 = vector.load %arg4[%c3_37, %c0_38] : memref<5x128xf32, #tpu.memory_space<vmem>>, vector<1x128xf32>
    %60 = vector.shape_cast %59 : vector<1x128xf32> to vector<128xf32>
    %61 = vector.shape_cast %60 : vector<128xf32> to vector<1x1x128xf32>
    %62 = vector.broadcast %61 : vector<1x1x128xf32> to vector<8x16x128xf32>
    %63 = arith.mulf %58, %62 : vector<8x16x128xf32>
    %64 = arith.addf %57, %63 : vector<8x16x128xf32>
    %c0_39 = arith.constant 0 : index
    %c8 = arith.constant 8 : index
    %c0_40 = arith.constant 0 : index
    %65 = vector.load %arg9[%c0_39, %c8, %c0_40] : memref<8x24x128xf32, #tpu.memory_space<vmem>>, vector<8x16x128xf32>
    %c4_41 = arith.constant 4 : index
    %c0_42 = arith.constant 0 : index
    %66 = vector.load %arg4[%c4_41, %c0_42] : memref<5x128xf32, #tpu.memory_space<vmem>>, vector<1x128xf32>
    %67 = vector.shape_cast %66 : vector<1x128xf32> to vector<128xf32>
    %68 = vector.shape_cast %67 : vector<128xf32> to vector<1x1x128xf32>
    %69 = vector.broadcast %68 : vector<1x1x128xf32> to vector<8x16x128xf32>
    %70 = arith.mulf %65, %69 : vector<8x16x128xf32>
    %71 = arith.addf %64, %70 : vector<8x16x128xf32>
    %cst_43 = arith.constant 0.000000e+00 : f32
    %72 = vector.broadcast %cst_43 : f32 to vector<2x16x128xf32>
    %73 = tpu.concatenate %72, %71, %72 in 0 : vector<2x16x128xf32>, vector<8x16x128xf32>, vector<2x16x128xf32> -> vector<12x16x128xf32>
    %74 = vector.extract_strided_slice %73 {offsets = [0, 0, 0], sizes = [8, 16, 128], strides = [1, 1, 1]} : vector<12x16x128xf32> to vector<8x16x128xf32>
    %c0_44 = arith.constant 0 : index
    %c0_45 = arith.constant 0 : index
    %75 = vector.load %arg6[%c0_44, %c0_45] : memref<5x128xf32, #tpu.memory_space<vmem>>, vector<1x128xf32>
    %76 = vector.shape_cast %75 : vector<1x128xf32> to vector<128xf32>
    %77 = vector.shape_cast %76 : vector<128xf32> to vector<1x1x128xf32>
    %78 = vector.broadcast %77 : vector<1x1x128xf32> to vector<8x16x128xf32>
    %79 = arith.mulf %74, %78 : vector<8x16x128xf32>
    %c0_46 = arith.constant 0 : index
    %c0_47 = arith.constant 0 : index
    %80 = vector.load %arg7[%c0_46, %c0_47] : memref<1x128xf32, #tpu.memory_space<vmem>>, vector<1x128xf32>
    %81 = vector.shape_cast %80 : vector<1x128xf32> to vector<128xf32>
    %82 = vector.shape_cast %81 : vector<128xf32> to vector<1x1x128xf32>
    %83 = vector.broadcast %82 : vector<1x1x128xf32> to vector<8x16x128xf32>
    %84 = arith.addf %79, %83 : vector<8x16x128xf32>
    %85 = vector.extract_strided_slice %73 {offsets = [1, 0, 0], sizes = [8, 16, 128], strides = [1, 1, 1]} : vector<12x16x128xf32> to vector<8x16x128xf32>
    %c1_48 = arith.constant 1 : index
    %c0_49 = arith.constant 0 : index
    %86 = vector.load %arg6[%c1_48, %c0_49] : memref<5x128xf32, #tpu.memory_space<vmem>>, vector<1x128xf32>
    %87 = vector.shape_cast %86 : vector<1x128xf32> to vector<128xf32>
    %88 = vector.shape_cast %87 : vector<128xf32> to vector<1x1x128xf32>
    %89 = vector.broadcast %88 : vector<1x1x128xf32> to vector<8x16x128xf32>
    %90 = arith.mulf %85, %89 : vector<8x16x128xf32>
    %91 = arith.addf %84, %90 : vector<8x16x128xf32>
    %92 = vector.extract_strided_slice %73 {offsets = [2, 0, 0], sizes = [8, 16, 128], strides = [1, 1, 1]} : vector<12x16x128xf32> to vector<8x16x128xf32>
    %c2_50 = arith.constant 2 : index
    %c0_51 = arith.constant 0 : index
    %93 = vector.load %arg6[%c2_50, %c0_51] : memref<5x128xf32, #tpu.memory_space<vmem>>, vector<1x128xf32>
    %94 = vector.shape_cast %93 : vector<1x128xf32> to vector<128xf32>
    %95 = vector.shape_cast %94 : vector<128xf32> to vector<1x1x128xf32>
    %96 = vector.broadcast %95 : vector<1x1x128xf32> to vector<8x16x128xf32>
    %97 = arith.mulf %92, %96 : vector<8x16x128xf32>
    %98 = arith.addf %91, %97 : vector<8x16x128xf32>
    %99 = vector.extract_strided_slice %73 {offsets = [3, 0, 0], sizes = [8, 16, 128], strides = [1, 1, 1]} : vector<12x16x128xf32> to vector<8x16x128xf32>
    %c3_52 = arith.constant 3 : index
    %c0_53 = arith.constant 0 : index
    %100 = vector.load %arg6[%c3_52, %c0_53] : memref<5x128xf32, #tpu.memory_space<vmem>>, vector<1x128xf32>
    %101 = vector.shape_cast %100 : vector<1x128xf32> to vector<128xf32>
    %102 = vector.shape_cast %101 : vector<128xf32> to vector<1x1x128xf32>
    %103 = vector.broadcast %102 : vector<1x1x128xf32> to vector<8x16x128xf32>
    %104 = arith.mulf %99, %103 : vector<8x16x128xf32>
    %105 = arith.addf %98, %104 : vector<8x16x128xf32>
    %106 = vector.extract_strided_slice %73 {offsets = [4, 0, 0], sizes = [8, 16, 128], strides = [1, 1, 1]} : vector<12x16x128xf32> to vector<8x16x128xf32>
    %c4_54 = arith.constant 4 : index
    %c0_55 = arith.constant 0 : index
    %107 = vector.load %arg6[%c4_54, %c0_55] : memref<5x128xf32, #tpu.memory_space<vmem>>, vector<1x128xf32>
    %108 = vector.shape_cast %107 : vector<1x128xf32> to vector<128xf32>
    %109 = vector.shape_cast %108 : vector<128xf32> to vector<1x1x128xf32>
    %110 = vector.broadcast %109 : vector<1x1x128xf32> to vector<8x16x128xf32>
    %111 = arith.mulf %106, %110 : vector<8x16x128xf32>
    %112 = arith.addf %105, %111 : vector<8x16x128xf32>
    %cst_56 = arith.constant 0.000000e+00 : f32
    %113 = vector.broadcast %cst_56 : f32 to vector<8x16x128xf32>
    %114 = arith.subf %113, %112 : vector<8x16x128xf32>
    %115 = math.exp %114 : vector<8x16x128xf32>
    %cst_57 = arith.constant 1.000000e+00 : f32
    %116 = vector.broadcast %cst_57 : f32 to vector<8x16x128xf32>
    %117 = arith.addf %116, %115 : vector<8x16x128xf32>
    %118 = tpu.reciprocal %117 {approx = true} : vector<8x16x128xf32> -> vector<8x16x128xf32>
    %119 = vector.shape_cast %118 : vector<8x16x128xf32> to vector<8x1x16x128xf32>
    %120 = vector.shape_cast %119 : vector<8x1x16x128xf32> to vector<8x1x16x128xf32>
    %121 = vector.broadcast %120 : vector<8x1x16x128xf32> to vector<8x2x16x128xf32>
    %122 = vector.shape_cast %121 : vector<8x2x16x128xf32> to vector<16x16x128xf32>
    %123 = arith.truncf %122 : vector<16x16x128xf32> to vector<16x16x128xbf16>
    %c0_58 = arith.constant 0 : index
    %c0_59 = arith.constant 0 : index
    %c0_60 = arith.constant 0 : index
    %c0_61 = arith.constant 0 : index
    %124 = vector.load %arg8[%c0_58, %c0_59, %c0_60, %c0_61] : memref<1x16x16x128xbf16, #tpu.memory_space<vmem>>, vector<1x16x16x128xbf16>
    %125 = vector.shape_cast %124 : vector<1x16x16x128xbf16> to vector<16x16x128xbf16>
    %126 = vector.shape_cast %123 : vector<16x16x128xbf16> to vector<1x16x16x128xbf16>
    tpu.vector_store %arg8[%c0_58, %c0_59, %c0_60, %c0_61], %126 {strides = array<i32>} : memref<1x16x16x128xbf16, #tpu.memory_space<vmem>>, vector<1x16x16x128xbf16>,
    return
  }
  func.func @transform_0(%arg0: i32) -> (i32, i32, i32, i32) {
    %c0_i32 = arith.constant 0 : i32
    %c0_i32_0 = arith.constant 0 : i32
    %c0_i32_1 = arith.constant 0 : i32
    %c0_i32_2 = arith.constant 0 : i32
    return %arg0, %c0_i32, %c0_i32_0, %c0_i32_1 : i32, i32, i32, i32
  }
  func.func @transform_1(%arg0: i32) -> (i32, i32) {
    %c0_i32 = arith.constant 0 : i32
    %c0_i32_0 = arith.constant 0 : i32
    %c0_i32_1 = arith.constant 0 : i32
    return %c0_i32, %c0_i32_0 : i32, i32
  }
  func.func @transform_2(%arg0: i32) -> (i32, i32) {
    %c0_i32 = arith.constant 0 : i32
    %c0_i32_0 = arith.constant 0 : i32
    %c0_i32_1 = arith.constant 0 : i32
    return %c0_i32, %c0_i32_0 : i32, i32
  }
  func.func @transform_3(%arg0: i32) -> (i32, i32) {
    %c0_i32 = arith.constant 0 : i32
    %c0_i32_0 = arith.constant 0 : i32
    %c0_i32_1 = arith.constant 0 : i32
    return %c0_i32, %c0_i32_0 : i32, i32
  }
  func.func @transform_4(%arg0: i32) -> (i32, i32) {
    %c0_i32 = arith.constant 0 : i32
    %c0_i32_0 = arith.constant 0 : i32
    %c0_i32_1 = arith.constant 0 : i32
    return %c0_i32, %c0_i32_0 : i32, i32
  }
  func.func @transform_5(%arg0: i32) -> (i32, i32) {
    %c0_i32 = arith.constant 0 : i32
    %c0_i32_0 = arith.constant 0 : i32
    %c0_i32_1 = arith.constant 0 : i32
    return %c0_i32, %c0_i32_0 : i32, i32
  }
  func.func @transform_6(%arg0: i32) -> (i32, i32) {
    %c0_i32 = arith.constant 0 : i32
    %c0_i32_0 = arith.constant 0 : i32
    %c0_i32_1 = arith.constant 0 : i32
    return %c0_i32, %c0_i32_0 : i32, i32
  }
  func.func @transform_7(%arg0: i32) -> (i32, i32, i32, i32) {
    %c0_i32 = arith.constant 0 : i32
    %c0_i32_0 = arith.constant 0 : i32
    %c0_i32_1 = arith.constant 0 : i32
    %c0_i32_2 = arith.constant 0 : i32
    return %arg0, %c0_i32, %c0_i32_0, %c0_i32_1 : i32, i32, i32, i32
  }
}

</mosaic_0001>

<llo_original>
// kernel: fca_forward.1
$region0: #{fca_forward.1}
  #allocation0 [shape = 'u32[]', space=smem, size = 0x4, offset = 0x4, fixed_abs, tag = 'smem constant byte address 0x4 - core index']
  #allocation1 [shape = 'u32[144,128]{1,0:T(1,128)}', space=vmem, size = 0x12000, scoped, tag = 'internal scratch']
  #allocation2 [shape = 'f32[8,24,128]{2,1,0:T(8,128)}', space=vmem, size = 0x18000, scoped, tag = 'scratch operand']
  %s0 = inlined_call_operand.vmem [shape: bf16[2,16,16,4], index: 0, kind: input, shape index: {}]
  %s1 = inlined_call_operand.vmem [shape: f32[4,128], index: 1, kind: input, shape index: {}]
  %s2 = inlined_call_operand.vmem [shape: f32[1,128], index: 2, kind: input, shape index: {}]
  %s3 = inlined_call_operand.vmem [shape: f32[5,128], index: 3, kind: input, shape index: {}]
  %s4 = inlined_call_operand.vmem [shape: f32[1,128], index: 4, kind: input, shape index: {}]
  %s5 = inlined_call_operand.vmem [shape: f32[5,128], index: 5, kind: input, shape index: {}]
  %s6 = inlined_call_operand.vmem [shape: f32[1,128], index: 6, kind: input, shape index: {}]
  %s7 = inlined_call_operand.vmem [shape: bf16[2,16,16,128], index: 7, kind: output, shape index: {}]
  %s8 = sld [smem:[#allocation0]]
  $region61: #{fca_forward.1} parent=0
    _
  %s10 = ssub.s32 1, %s8
  %s11 = scalar_select 0, %s10, %s8
  loop: start=0, step=1, limit=4
  $region2: #{fca_forward.1} parent=0 // loop_pre_header
    _
  $region3: #{fca_forward.1} parent=0 // loop_header
    %s13 = sphi 0, %s17
    %p14 = scmp.ge.s32.totalorder %s13, 4
    %s23 = sphi 0, %s25
    %s26 = sphi 0, %s23
    %s27 = sphi 0, %s26
    %s43 = sphi 0, %s27
    %s47 = sphi 0, %s47
    %s49 = sphi 0, %s47
    %s50 = sphi 0, %s49
    %s64 = sphi 0, %s50
    %s68 = sphi 0, %s68
    %s70 = sphi 0, %s68
    %s71 = sphi 0, %s70
    %s85 = sphi 0, %s71
    %s89 = sphi 0, %s89
    %s91 = sphi 0, %s89
    %s92 = sphi 0, %s91
    %s106 = sphi 0, %s92
    %s110 = sphi 0, %s110
    %s112 = sphi 0, %s110
    %s113 = sphi 0, %s112
    %s127 = sphi 0, %s113
    %s131 = sphi 0, %s131
    %s133 = sphi 0, %s131
    %s134 = sphi 0, %s133
    %s148 = sphi 0, %s134
    %s152 = sphi 0, %s152
    %s154 = sphi 0, %s152
    %s155 = sphi 0, %s154
    %s169 = sphi 0, %s155
    %s175 = sphi 0, %s177
    %s178 = sphi 0, %s175
    %s179 = sphi 0, %s178
    %s195 = sphi 0, %s179
  $region4: #{fca_forward.1} parent=0 // loop_header_branch
    %16 = sbr.rel (%p14) target = $region8
  $region5: #{fca_forward.1} parent=0 // loop_body
    %s18 = ssub.s32 %s13, 1
    %s19 = ssub.s32 %s13, 2
    %s20 = sadd.s32 %s13, 1
    %s21 = ssub.s32 %s13, %s20
    %p22 = scmp.eq.s32.totalorder %s21, 0
    %s24 = sadd.s32 %s23, 1
    %s25 = scalar_select %p22, %s23, %s24
    %p28 = pneg %p22
    %p29 = scmp.eq.s32.totalorder %s13, 1
    %p30 = por %p28, %p29
    %p31 = scmp.ne.s32.totalorder %s23, %s26
    %p32 = scmp.eq.s32.totalorder %s13, 0
    %p33 = por %p31, %p32
    %p34 = scmp.ne.s32.totalorder %s23, %s26
    %p35 = scmp.eq.s32.totalorder %s18, 1
    %p36 = por %p34, %p35
    %p37 = scmp.ne.s32.totalorder %s26, %s27
    %p38 = scmp.eq.s32.totalorder %s18, 0
    %p39 = por %p37, %p38
    %p40 = scmp.ne.s32.totalorder %s26, %s27
    %p41 = scmp.eq.s32.totalorder %s19, 1
    %p42 = por %p40, %p41
    %p44 = scmp.ne.s32.totalorder %s27, %s43
    %p45 = scmp.eq.s32.totalorder %s19, 0
    %p46 = por %p44, %p45
    %s48 = sadd.s32 %s47, 1
    %p51 = scmp.eq.s32.totalorder %s13, 1
    %p52 = scmp.ne.s32.totalorder %s47, %s49
    %p53 = scmp.eq.s32.totalorder %s13, 0
    %p54 = por %p52, %p53
    %p55 = scmp.ne.s32.totalorder %s47, %s49
    %p56 = scmp.eq.s32.totalorder %s18, 1
    %p57 = por %p55, %p56
    %p58 = scmp.ne.s32.totalorder %s49, %s50
    %p59 = scmp.eq.s32.totalorder %s18, 0
    %p60 = por %p58, %p59
    %p61 = scmp.ne.s32.totalorder %s49, %s50
    %p62 = scmp.eq.s32.totalorder %s19, 1
    %p63 = por %p61, %p62
    %p65 = scmp.ne.s32.totalorder %s50, %s64
    %p66 = scmp.eq.s32.totalorder %s19, 0
    %p67 = por %p65, %p66
    %s69 = sadd.s32 %s68, 1
    %p72 = scmp.eq.s32.totalorder %s13, 1
    %p73 = scmp.ne.s32.totalorder %s68, %s70
    %p74 = scmp.eq.s32.totalorder %s13, 0
    %p75 = por %p73, %p74
    %p76 = scmp.ne.s32.totalorder %s68, %s70
    %p77 = scmp.eq.s32.totalorder %s18, 1
    %p78 = por %p76, %p77
    %p79 = scmp.ne.s32.totalorder %s70, %s71
    %p80 = scmp.eq.s32.totalorder %s18, 0
    %p81 = por %p79, %p80
    %p82 = scmp.ne.s32.totalorder %s70, %s71
    %p83 = scmp.eq.s32.totalorder %s19, 1
    %p84 = por %p82, %p83
    %p86 = scmp.ne.s32.totalorder %s71, %s85
    %p87 = scmp.eq.s32.totalorder %s19, 0
    %p88 = por %p86, %p87
    %s90 = sadd.s32 %s89, 1
    %p93 = scmp.eq.s32.totalorder %s13, 1
    %p94 = scmp.ne.s32.totalorder %s89, %s91
    %p95 = scmp.eq.s32.totalorder %s13, 0
    %p96 = por %p94, %p95
    %p97 = scmp.ne.s32.totalorder %s89, %s91
    %p98 = scmp.eq.s32.totalorder %s18, 1
    %p99 = por %p97, %p98
    %p100 = scmp.ne.s32.totalorder %s91, %s92
    %p101 = scmp.eq.s32.totalorder %s18, 0
    %p102 = por %p100, %p101
    %p103 = scmp.ne.s32.totalorder %s91, %s92
    %p104 = scmp.eq.s32.totalorder %s19, 1
    %p105 = por %p103, %p104
    %p107 = scmp.ne.s32.totalorder %s92, %s106
    %p108 = scmp.eq.s32.totalorder %s19, 0
    %p109 = por %p107, %p108
    %s111 = sadd.s32 %s110, 1
    %p114 = scmp.eq.s32.totalorder %s13, 1
    %p115 = scmp.ne.s32.totalorder %s110, %s112
    %p116 = scmp.eq.s32.totalorder %s13, 0
    %p117 = por %p115, %p116
    %p118 = scmp.ne.s32.totalorder %s110, %s112
    %p119 = scmp.eq.s32.totalorder %s18, 1
    %p120 = por %p118, %p119
    %p121 = scmp.ne.s32.totalorder %s112, %s113
    %p122 = scmp.eq.s32.totalorder %s18, 0
    %p123 = por %p121, %p122
    %p124 = scmp.ne.s32.totalorder %s112, %s113
    %p125 = scmp.eq.s32.totalorder %s19, 1
    %p126 = por %p124, %p125
    %p128 = scmp.ne.s32.totalorder %s113, %s127
    %p129 = scmp.eq.s32.totalorder %s19, 0
    %p130 = por %p128, %p129
    %s132 = sadd.s32 %s131, 1
    %p135 = scmp.eq.s32.totalorder %s13, 1
    %p136 = scmp.ne.s32.totalorder %s131, %s133
    %p137 = scmp.eq.s32.totalorder %s13, 0
    %p138 = por %p136, %p137
    %p139 = scmp.ne.s32.totalorder %s131, %s133
    %p140 = scmp.eq.s32.totalorder %s18, 1
    %p141 = por %p139, %p140
    %p142 = scmp.ne.s32.totalorder %s133, %s134
    %p143 = scmp.eq.s32.totalorder %s18, 0
    %p144 = por %p142, %p143
    %p145 = scmp.ne.s32.totalorder %s133, %s134
    %p146 = scmp.eq.s32.totalorder %s19, 1
    %p147 = por %p145, %p146
    %p149 = scmp.ne.s32.totalorder %s134, %s148
    %p150 = scmp.eq.s32.totalorder %s19, 0
    %p151 = por %p149, %p150
    %s153 = sadd.s32 %s152, 1
    %p156 = scmp.eq.s32.totalorder %s13, 1
    %p157 = scmp.ne.s32.totalorder %s152, %s154
    %p158 = scmp.eq.s32.totalorder %s13, 0
    %p159 = por %p157, %p158
    %p160 = scmp.ne.s32.totalorder %s152, %s154
    %p161 = scmp.eq.s32.totalorder %s18, 1
    %p162 = por %p160, %p161
    %p163 = scmp.ne.s32.totalorder %s154, %s155
    %p164 = scmp.eq.s32.totalorder %s18, 0
    %p165 = por %p163, %p164
    %p166 = scmp.ne.s32.totalorder %s154, %s155
    %p167 = scmp.eq.s32.totalorder %s19, 1
    %p168 = por %p166, %p167
    %p170 = scmp.ne.s32.totalorder %s155, %s169
    %p171 = scmp.eq.s32.totalorder %s19, 0
    %p172 = por %p170, %p171
    %s173 = ssub.s32 %s13, %s20
    %p174 = scmp.eq.s32.totalorder %s173, 0
    %s176 = sadd.s32 %s175, 1
    %s177 = scalar_select %p174, %s175, %s176
    %p180 = pneg %p174
    %p181 = scmp.eq.s32.totalorder %s13, 1
    %p182 = por %p180, %p181
    %p183 = scmp.ne.s32.totalorder %s175, %s178
    %p184 = scmp.eq.s32.totalorder %s13, 0
    %p185 = por %p183, %p184
    %p186 = scmp.ne.s32.totalorder %s175, %s178
    %p187 = scmp.eq.s32.totalorder %s18, 1
    %p188 = por %p186, %p187
    %p189 = scmp.ne.s32.totalorder %s178, %s179
    %p190 = scmp.eq.s32.totalorder %s18, 0
    %p191 = por %p189, %p190
    %p192 = scmp.ne.s32.totalorder %s178, %s179
    %p193 = scmp.eq.s32.totalorder %s19, 1
    %p194 = por %p192, %p193
    %p196 = scmp.ne.s32.totalorder %s179, %s195
    %p197 = scmp.eq.s32.totalorder %s19, 0
    %p198 = por %p196, %p197
    %p199 = scmp.le.s32.totalorder 1, %s13
    %p200 = scmp.lt.s32.totalorder %s13, 3
    %p201 = pnand %p199, %p200
    %p202 = pneg %p201
    // Predicated region
    $region9: #{fca_forward.1} parent=5 // pred_check
      _
    $region10: #{fca_forward.1} parent=5 // pred_check_branch
      %204 = sbr.rel (%p201) target = $region12
    $region11: #{fca_forward.1} parent=5 // pred_region
      %s205 = ssub.s32 %s13, 1
      // Predicated region
      $region13: #{fca_forward.1} parent=11 // pred_check
        %p206 = pneg %p60
      $region14: #{fca_forward.1} parent=11 // pred_check_branch
        %208 = sbr.rel (%p206) target = $region16
      $region15: #{fca_forward.1} parent=11 // pred_region
        _
      $region16: #{fca_forward.1} parent=11 // pred_fallthru
        _
      // Predicated region
      $region17: #{fca_forward.1} parent=11 // pred_check
        %p209 = pneg %p81
      $region18: #{fca_forward.1} parent=11 // pred_check_branch
        %211 = sbr.rel (%p209) target = $region20
      $region19: #{fca_forward.1} parent=11 // pred_region
        _
      $region20: #{fca_forward.1} parent=11 // pred_fallthru
        _
      // Predicated region
      $region21: #{fca_forward.1} parent=11 // pred_check
        %p212 = pneg %p102
      $region22: #{fca_forward.1} parent=11 // pred_check_branch
        %214 = sbr.rel (%p212) target = $region24
      $region23: #{fca_forward.1} parent=11 // pred_region
        _
      $region24: #{fca_forward.1} parent=11 // pred_fallthru
        _
      // Predicated region
      $region25: #{fca_forward.1} parent=11 // pred_check
        %p215 = pneg %p123
      $region26: #{fca_forward.1} parent=11 // pred_check_branch
        %217 = sbr.rel (%p215) target = $region28
      $region27: #{fca_forward.1} parent=11 // pred_region
        _
      $region28: #{fca_forward.1} parent=11 // pred_fallthru
        _
      // Predicated region
      $region29: #{fca_forward.1} parent=11 // pred_check
        %p218 = pneg %p144
      $region30: #{fca_forward.1} parent=11 // pred_check_branch
        %220 = sbr.rel (%p218) target = $region32
      $region31: #{fca_forward.1} parent=11 // pred_region
        _
      $region32: #{fca_forward.1} parent=11 // pred_fallthru
        _
      // Predicated region
      $region33: #{fca_forward.1} parent=11 // pred_check
        %p221 = pneg %p165
      $region34: #{fca_forward.1} parent=11 // pred_check_branch
        %223 = sbr.rel (%p221) target = $region36
      $region35: #{fca_forward.1} parent=11 // pred_region
        _
      $region36: #{fca_forward.1} parent=11 // pred_fallthru
        _
    $region12: #{fca_forward.1} parent=5 // pred_fallthru
      _
    %p224 = scmp.lt.s32.totalorder %s13, 2
    // Predicated region
    $region37: #{fca_forward.1} parent=5 // pred_check
      %p225 = pneg %p224
    $region38: #{fca_forward.1} parent=5 // pred_check_branch
      %227 = sbr.rel (%p225) target = $region40
    $region39: #{fca_forward.1} parent=5 // pred_region
      // Predicated region
      $region41: #{fca_forward.1} parent=39 // pred_check
        %p228 = pneg %p33
      $region42: #{fca_forward.1} parent=39 // pred_check_branch
        %230 = sbr.rel (%p228) target = $region44
      $region43: #{fca_forward.1} parent=39 // pred_region
        %p231 = scmp.lt.s32.totalorder %s13, 1
        %s232 = scalar_select %p231, %s13, 1
        %s233 = smul.addr %s232, 32
        %s234 = smul.addr %s233, 4
        %s235 = scalar_lea.vmem %s0, %s234
      $region44: #{fca_forward.1} parent=39 // pred_fallthru
        _
    $region40: #{fca_forward.1} parent=5 // pred_fallthru
      _
    %p236 = scmp.le.s32.totalorder 1, %s13
    %p237 = scmp.lt.s32.totalorder %s13, 3
    %p238 = pnand %p236, %p237
    %p239 = pneg %p238
    // Predicated region
    $region45: #{fca_forward.1} parent=5 // pred_check
      _
    $region46: #{fca_forward.1} parent=5 // pred_check_branch
      %241 = sbr.rel (%p238) target = $region48
    $region47: #{fca_forward.1} parent=5 // pred_region
      %s242 = ssub.s32 %s13, 1
      %p243 = scmp.lt.s32.totalorder %s18, 1
      %s244 = scalar_select %p243, %s18, 1
      %s245 = smul.addr %s244, 32
      %s246 = smul.addr %s245, 4
      %s247 = scalar_lea.vmem %s0, %s246
      %p248 = pneg %p39
      %p249 = pneg %p36
      %p250 = pneg %p60
      %p251 = pneg %p57
      %p252 = pneg %p81
      %p253 = pneg %p78
      %p254 = pneg %p102
      %p255 = pneg %p99
      %p256 = pneg %p123
      %p257 = pneg %p120
      %p258 = pneg %p144
      %p259 = pneg %p141
      %p260 = pneg %p165
      %p261 = pneg %p162
      %p262 = pneg %p191
      %p263 = pneg %p188
      %p264 = scmp.lt.s32.totalorder %s18, 1
      %s265 = scalar_select %p264, %s18, 1
      %s266 = smul.addr %s265, 32
      %s267 = smul.addr %s266, 4
      %s268 = scalar_lea.vmem %s7, %s267
      %p269 = scmp.lt.s32.totalorder %s18, 1
      %s270 = scalar_select %p269, %s18, 1
      %s271 = smul.addr %s270, 32
      %s272 = smul.addr %s271, 4
      %s273 = scalar_lea.vmem %s0, %s272
      %p274 = scmp.lt.s32.totalorder %s18, 1
      %s275 = scalar_select %p274, %s18, 1
      %s276 = smul.addr %s275, 32
      %s277 = smul.addr %s276, 4
      %s278 = scalar_lea.vmem %s7, %s277
      %279 = vst [vmem:[#allocation2] sm:$0xf] 0.0
      %280 = vst [vmem:[#allocation2 + $0x18] sm:$0xf] 0.0
      %281 = vst [vmem:[#allocation2 + $0x30] sm:$0xf] 0.0
      %282 = vst [vmem:[#allocation2 + $0x48] sm:$0xf] 0.0
      %283 = vst [vmem:[#allocation2 + $0x60] sm:$0xf] 0.0
      %284 = vst [vmem:[#allocation2 + $0x78] sm:$0xf] 0.0
      %285 = vst [vmem:[#allocation2 + $0x90] sm:$0xf] 0.0
      %286 = vst [vmem:[#allocation2 + $0xa8] sm:$0xf] 0.0
      %287 = vst [vmem:[#allocation2 + $0x14] sm:$0xf] 0.0
      %288 = vst [vmem:[#allocation2 + $0x2c] sm:$0xf] 0.0
      %289 = vst [vmem:[#allocation2 + $0x44] sm:$0xf] 0.0
      %290 = vst [vmem:[#allocation2 + $0x5c] sm:$0xf] 0.0
      %291 = vst [vmem:[#allocation2 + $0x74] sm:$0xf] 0.0
      %292 = vst [vmem:[#allocation2 + $0x8c] sm:$0xf] 0.0
      %293 = vst [vmem:[#allocation2 + $0xa4] sm:$0xf] 0.0
      %294 = vst [vmem:[#allocation2 + $0xbc] sm:$0xf] 0.0
      %v295 = vld [vmem:[%s273] sm:$0xf]
      %v296 = vld [vmem:[%s273 + $0x4] sm:$0xf]
      %v297 = vld [vmem:[%s273 + $0x8] sm:$0xf]
      %v298 = vld [vmem:[%s273 + $0xc] sm:$0xf]
      %v299 = vld [vmem:[%s273 + $0x10] sm:$0xf]
      %v300 = vld [vmem:[%s273 + $0x14] sm:$0xf]
      %v301 = vld [vmem:[%s273 + $0x18] sm:$0xf]
      %v302 = vld [vmem:[%s273 + $0x1c] sm:$0xf]
      %v303 = vld [vmem:[%s273 + $0x20] sm:$0xf]
      %v304 = vld [vmem:[%s273 + $0x24] sm:$0xf]
      %v305 = vld [vmem:[%s273 + $0x28] sm:$0xf]
      %v306 = vld [vmem:[%s273 + $0x2c] sm:$0xf]
      %v307 = vld [vmem:[%s273 + $0x30] sm:$0xf]
      %v308 = vld [vmem:[%s273 + $0x34] sm:$0xf]
      %v309 = vld [vmem:[%s273 + $0x38] sm:$0xf]
      %v310 = vld [vmem:[%s273 + $0x3c] sm:$0xf]
      %v311 = vld [vmem:[%s273 + $0x40] sm:$0xf]
      %v312 = vld [vmem:[%s273 + $0x44] sm:$0xf]
      %v313 = vld [vmem:[%s273 + $0x48] sm:$0xf]
      %v314 = vld [vmem:[%s273 + $0x4c] sm:$0xf]
      %v315 = vld [vmem:[%s273 + $0x50] sm:$0xf]
      %v316 = vld [vmem:[%s273 + $0x54] sm:$0xf]
      %v317 = vld [vmem:[%s273 + $0x58] sm:$0xf]
      %v318 = vld [vmem:[%s273 + $0x5c] sm:$0xf]
      %v319 = vld [vmem:[%s273 + $0x60] sm:$0xf]
      %v320 = vld [vmem:[%s273 + $0x64] sm:$0xf]
      %v321 = vld [vmem:[%s273 + $0x68] sm:$0xf]
      %v322 = vld [vmem:[%s273 + $0x6c] sm:$0xf]
      %v323 = vld [vmem:[%s273 + $0x70] sm:$0xf]
      %v324 = vld [vmem:[%s273 + $0x74] sm:$0xf]
      %v325 = vld [vmem:[%s273 + $0x78] sm:$0xf]
      %v326 = vld [vmem:[%s273 + $0x7c] sm:$0xf]
      %v327 = vunpack.c.l.bf16 %v295
      %v328 = vunpack.c.l.bf16 %v296
      %v329 = vunpack.c.l.bf16 %v299
      %v330 = vunpack.c.l.bf16 %v300
      %v331 = vunpack.c.l.bf16 %v303
      %v332 = vunpack.c.l.bf16 %v304
      %v333 = vunpack.c.l.bf16 %v307
      %v334 = vunpack.c.l.bf16 %v308
      %v335 = vunpack.c.l.bf16 %v311
      %v336 = vunpack.c.l.bf16 %v312
      %v337 = vunpack.c.l.bf16 %v315
      %v338 = vunpack.c.l.bf16 %v316
      %v339 = vunpack.c.l.bf16 %v319
      %v340 = vunpack.c.l.bf16 %v320
      %v341 = vunpack.c.l.bf16 %v323
      %v342 = vunpack.c.l.bf16 %v324
      %v343 = vunpack.c.l.bf16 %v297
      %v344 = vunpack.c.l.bf16 %v298
      %v345 = vunpack.c.l.bf16 %v301
      %v346 = vunpack.c.l.bf16 %v302
      %v347 = vunpack.c.l.bf16 %v305
      %v348 = vunpack.c.l.bf16 %v306
      %v349 = vunpack.c.l.bf16 %v309
      %v350 = vunpack.c.l.bf16 %v310
      %v351 = vunpack.c.l.bf16 %v313
      %v352 = vunpack.c.l.bf16 %v314
      %v353 = vunpack.c.l.bf16 %v317
      %v354 = vunpack.c.l.bf16 %v318
      %v355 = vunpack.c.l.bf16 %v321
      %v356 = vunpack.c.l.bf16 %v322
      %v357 = vunpack.c.l.bf16 %v325
      %v358 = vunpack.c.l.bf16 %v326
      %v359 = vadd.f32 %v327, %v343
      %v360 = vadd.f32 %v328, %v344
      %v361 = vadd.f32 %v329, %v345
      %v362 = vadd.f32 %v330, %v346
      %v363 = vadd.f32 %v331, %v347
      %v364 = vadd.f32 %v332, %v348
      %v365 = vadd.f32 %v333, %v349
      %v366 = vadd.f32 %v334, %v350
      %v367 = vadd.f32 %v335, %v351
      %v368 = vadd.f32 %v336, %v352
      %v369 = vadd.f32 %v337, %v353
      %v370 = vadd.f32 %v338, %v354
      %v371 = vadd.f32 %v339, %v355
      %v372 = vadd.f32 %v340, %v356
      %v373 = vadd.f32 %v341, %v357
      %v374 = vadd.f32 %v342, %v358
      %v375 = vld [vmem:[%s1] sm:$0xf]
      %vm376 = vcmask 31744
      %v378 = vsel %vm376, %v359, 0
      %v381 = vsel %vm376, %v360, 0
      %v384 = vsel %vm376, %v361, 0
      %v387 = vsel %vm376, %v362, 0
      %v390 = vsel %vm376, %v363, 0
      %v393 = vsel %vm376, %v364, 0
      %v396 = vsel %vm376, %v365, 0
      %v399 = vsel %vm376, %v366, 0
      %v402 = vsel %vm376, %v367, 0
      %v405 = vsel %vm376, %v368, 0
      %v408 = vsel %vm376, %v369, 0
      %v411 = vsel %vm376, %v370, 0
      %v414 = vsel %vm376, %v371, 0
      %v417 = vsel %vm376, %v372, 0
      %v420 = vsel %vm376, %v373, 0
      %v423 = vsel %vm376, %v374, 0
      %vm425 = vcmask 1043456
      %v427 = vsel %vm425, %v375, 0
      %429 = vmatprep.subr.mxu0 0.0
      %430 = vmatpush1.msra.mxu0 0.0
      %431 = vmatprep.subr.mxu0 0.0
      %432 = vmatpush1.msra.mxu0 0.0
      %433 = vmatprep.subr.mxu0 0.0
      %434 = vmatpush1.msra.mxu0 0.0
      %435 = vmatprep.subr.mxu0 0.0
      %436 = vmatpush1.msra.mxu0 0.0
      %437 = vmatprep.subr.mxu0 0.0
      %438 = vmatpush1.msra.mxu0 0.0
      %439 = vmatprep.subr.mxu0 0.0
      %440 = vmatpush1.msra.mxu0 0.0
      %441 = vmatprep.subr.mxu0 0.0
      %442 = vmatpush1.msra.mxu0 0.0
      %443 = vmatprep.subr.mxu0 0.0
      %444 = vmatpush1.msra.mxu0 0.0
      %445 = vmatprep.subr.mxu0 0.0
      %446 = vmatpush1.msra.mxu0 0.0
      %447 = vmatprep.subr.mxu0 0.0
      %448 = vmatpush1.msra.mxu0 0.0
      %449 = vmatprep.subr.mxu0 0.0
      %450 = vmatpush1.msra.mxu0 0.0
      %451 = vmatprep.subr.mxu0 0.0
      %452 = vmatpush1.msra.mxu0 0.0
      %453 = vmatprep.subr.mxu0 0.0
      %454 = vmatpush1.msra.mxu0 0.0
      %455 = vmatprep.subr.mxu0 0.0
      %456 = vmatpush1.msra.mxu0 0.0
      %457 = vmatprep.subr.mxu0 0.0
      %458 = vmatpush1.msra.mxu0 0.0
      %459 = vmatprep.subr.mxu0 0.0
      %460 = vmatpush1.msra.mxu0 %v427
      %461 = vmatprep.subr.mxu0 0.0
      %462 = vmatpush2.msra.mxu0 0.0
      %463 = vmatprep.subr.mxu0 0.0
      %464 = vmatpush2.msra.mxu0 0.0
      %465 = vmatprep.subr.mxu0 0.0
      %466 = vmatpush2.msra.mxu0 0.0
      %467 = vmatprep.subr.mxu0 0.0
      %468 = vmatpush2.msra.mxu0 0.0
      %469 = vmatprep.subr.mxu0 0.0
      %470 = vmatpush2.msra.mxu0 0.0
      %471 = vmatprep.subr.mxu0 0.0
      %472 = vmatpush2.msra.mxu0 0.0
      %473 = vmatprep.subr.mxu0 0.0
      %474 = vmatpush2.msra.mxu0 0.0
      %475 = vmatprep.subr.mxu0 0.0
      %476 = vmatpush2.msra.mxu0 0.0
      %477 = vmatprep.subr.mxu0 0.0
      %478 = vmatpush2.msra.mxu0 0.0
      %479 = vmatprep.subr.mxu0 0.0
      %480 = vmatpush2.msra.mxu0 0.0
      %481 = vmatprep.subr.mxu0 0.0
      %482 = vmatpush2.msra.mxu0 0.0
      %483 = vmatprep.subr.mxu0 0.0
      %484 = vmatpush2.msra.mxu0 0.0
      %485 = vmatprep.subr.mxu0 0.0
      %486 = vmatpush2.msra.mxu0 0.0
      %487 = vmatprep.subr.mxu0 0.0
      %488 = vmatpush2.msra.mxu0 0.0
      %489 = vmatprep.subr.mxu0 0.0
      %490 = vmatpush2.msra.mxu0 0.0
      %491 = vmatprep.subr.mxu0 0.0
      %492 = vmatpush2.msra.mxu0 0.0
      %493 = vmatprep.mubr.f32.mxu0 0.0
      %494 = vmatmul.mubr.f32.gmra.mxu0 %v378
      %v495 = vpop.f32.mrf.mxu0
      %v496 = vadd.f32 0.0, %v495
      %v497 = vpop.f32.mrf.mxu0
      %498 = vmatprep.mubr.f32.mxu0 0.0
      %499 = vmatmul.mubr.f32.gmra.mxu0 %v381
      %v500 = vpop.f32.mrf.mxu0
      %v501 = vadd.f32 0.0, %v500
      %v502 = vpop.f32.mrf.mxu0
      %503 = vmatprep.mubr.f32.mxu0 0.0
      %504 = vmatmul.mubr.f32.gmra.mxu0 %v384
      %v505 = vpop.f32.mrf.mxu0
      %v506 = vadd.f32 0.0, %v505
      %v507 = vpop.f32.mrf.mxu0
      %508 = vmatprep.mubr.f32.mxu0 0.0
      %509 = vmatmul.mubr.f32.gmra.mxu0 %v387
      %v510 = vpop.f32.mrf.mxu0
      %v511 = vadd.f32 0.0, %v510
      %v512 = vpop.f32.mrf.mxu0
      %513 = vmatprep.mubr.f32.mxu0 0.0
      %514 = vmatmul.mubr.f32.gmra.mxu0 %v390
      %v515 = vpop.f32.mrf.mxu0
      %v516 = vadd.f32 0.0, %v515
      %v517 = vpop.f32.mrf.mxu0
      %518 = vmatprep.mubr.f32.mxu0 0.0
      %519 = vmatmul.mubr.f32.gmra.mxu0 %v393
      %v520 = vpop.f32.mrf.mxu0
      %v521 = vadd.f32 0.0, %v520
      %v522 = vpop.f32.mrf.mxu0
      %523 = vmatprep.mubr.f32.mxu0 0.0
      %524 = vmatmul.mubr.f32.gmra.mxu0 %v396
      %v525 = vpop.f32.mrf.mxu0
      %v526 = vadd.f32 0.0, %v525
      %v527 = vpop.f32.mrf.mxu0
      %528 = vmatprep.mubr.f32.mxu0 0.0
      %529 = vmatmul.mubr.f32.gmra.mxu0 %v399
      %v530 = vpop.f32.mrf.mxu0
      %v531 = vadd.f32 0.0, %v530
      %v532 = vpop.f32.mrf.mxu0
      %533 = vmatprep.mubr.f32.mxu0 0.0
      %534 = vmatmul.mubr.f32.gmra.mxu0 %v402
      %v535 = vpop.f32.mrf.mxu0
      %v536 = vadd.f32 0.0, %v535
      %v537 = vpop.f32.mrf.mxu0
      %538 = vmatprep.mubr.f32.mxu0 0.0
      %539 = vmatmul.mubr.f32.gmra.mxu0 %v405
      %v540 = vpop.f32.mrf.mxu0
      %v541 = vadd.f32 0.0, %v540
      %v542 = vpop.f32.mrf.mxu0
      %543 = vmatprep.mubr.f32.mxu0 0.0
      %544 = vmatmul.mubr.f32.gmra.mxu0 %v408
      %v545 = vpop.f32.mrf.mxu0
      %v546 = vadd.f32 0.0, %v545
      %v547 = vpop.f32.mrf.mxu0
      %548 = vmatprep.mubr.f32.mxu0 0.0
      %549 = vmatmul.mubr.f32.gmra.mxu0 %v411
      %v550 = vpop.f32.mrf.mxu0
      %v551 = vadd.f32 0.0, %v550
      %v552 = vpop.f32.mrf.mxu0
      %553 = vmatprep.mubr.f32.mxu0 0.0
      %554 = vmatmul.mubr.f32.gmra.mxu0 %v414
      %v555 = vpop.f32.mrf.mxu0
      %v556 = vadd.f32 0.0, %v555
      %v557 = vpop.f32.mrf.mxu0
      %558 = vmatprep.mubr.f32.mxu0 0.0
      %559 = vmatmul.mubr.f32.gmra.mxu0 %v417
      %v560 = vpop.f32.mrf.mxu0
      %v561 = vadd.f32 0.0, %v560
      %v562 = vpop.f32.mrf.mxu0
      %563 = vmatprep.mubr.f32.mxu0 0.0
      %564 = vmatmul.mubr.f32.gmra.mxu0 %v420
      %v565 = vpop.f32.mrf.mxu0
      %v566 = vadd.f32 0.0, %v565
      %v567 = vpop.f32.mrf.mxu0
      %568 = vmatprep.mubr.f32.mxu0 0.0
      %569 = vmatmul.mubr.f32.gmra.mxu0 %v423
      %v570 = vpop.f32.mrf.mxu0
      %v571 = vadd.f32 0.0, %v570
      %v572 = vpop.f32.mrf.mxu0
      %573 = vdwg.mxu0
      %574 = vst [vmem:[#allocation2 + $0x4] sm:$0xff] %v496
      %575 = vst [vmem:[#allocation2 + $0xc] sm:$0xff] %v501
      %576 = vst [vmem:[#allocation2 + $0x1c] sm:$0xff] %v506
      %577 = vst [vmem:[#allocation2 + $0x24] sm:$0xff] %v511
      %578 = vst [vmem:[#allocation2 + $0x34] sm:$0xff] %v516
      %579 = vst [vmem:[#allocation2 + $0x3c] sm:$0xff] %v521
      %580 = vst [vmem:[#allocation2 + $0x4c] sm:$0xff] %v526
      %581 = vst [vmem:[#allocation2 + $0x54] sm:$0xff] %v531
      %582 = vst [vmem:[#allocation2 + $0x64] sm:$0xff] %v536
      %583 = vst [vmem:[#allocation2 + $0x6c] sm:$0xff] %v541
      %584 = vst [vmem:[#allocation2 + $0x7c] sm:$0xff] %v546
      %585 = vst [vmem:[#allocation2 + $0x84] sm:$0xff] %v551
      %586 = vst [vmem:[#allocation2 + $0x94] sm:$0xff] %v556
      %587 = vst [vmem:[#allocation2 + $0x9c] sm:$0xff] %v561
      %588 = vst [vmem:[#allocation2 + $0xac] sm:$0xff] %v566
      %589 = vst [vmem:[#allocation2 + $0xb4] sm:$0xff] %v571
      %v590 = vld [vmem:[#allocation2 + $0x3] sm:$0xff]
      %v591 = vld [vmem:[#allocation2 + $0xb] sm:$0xff]
      %v592 = vld [vmem:[#allocation2 + $0x1b] sm:$0xff]
      %v593 = vld [vmem:[#allocation2 + $0x23] sm:$0xff]
      %v594 = vld [vmem:[#allocation2 + $0x33] sm:$0xff]
      %v595 = vld [vmem:[#allocation2 + $0x3b] sm:$0xff]
      %v596 = vld [vmem:[#allocation2 + $0x4b] sm:$0xff]
      %v597 = vld [vmem:[#allocation2 + $0x53] sm:$0xff]
      %v598 = vld [vmem:[#allocation2 + $0x63] sm:$0xff]
      %v599 = vld [vmem:[#allocation2 + $0x6b] sm:$0xff]
      %v600 = vld [vmem:[#allocation2 + $0x7b] sm:$0xff]
      %v601 = vld [vmem:[#allocation2 + $0x83] sm:$0xff]
      %v602 = vld [vmem:[#allocation2 + $0x93] sm:$0xff]
      %v603 = vld [vmem:[#allocation2 + $0x9b] sm:$0xff]
      %v604 = vld [vmem:[#allocation2 + $0xab] sm:$0xff]
      %v605 = vld [vmem:[#allocation2 + $0xb3] sm:$0xff]
      %v606 = vld [vmem:[#allocation2 + $0x5] sm:$0xff]
      %v607 = vld [vmem:[#allocation2 + $0xd] sm:$0xff]
      %v608 = vld [vmem:[#allocation2 + $0x1d] sm:$0xff]
      %v609 = vld [vmem:[#allocation2 + $0x25] sm:$0xff]
      %v610 = vld [vmem:[#allocation2 + $0x35] sm:$0xff]
      %v611 = vld [vmem:[#allocation2 + $0x3d] sm:$0xff]
      %v612 = vld [vmem:[#allocation2 + $0x4d] sm:$0xff]
      %v613 = vld [vmem:[#allocation2 + $0x55] sm:$0xff]
      %v614 = vld [vmem:[#allocation2 + $0x65] sm:$0xff]
      %v615 = vld [vmem:[#allocation2 + $0x6d] sm:$0xff]
      %v616 = vld [vmem:[#allocation2 + $0x7d] sm:$0xff]
      %v617 = vld [vmem:[#allocation2 + $0x85] sm:$0xff]
      %v618 = vld [vmem:[#allocation2 + $0x95] sm:$0xff]
      %v619 = vld [vmem:[#allocation2 + $0x9d] sm:$0xff]
      %v620 = vld [vmem:[#allocation2 + $0xad] sm:$0xff]
      %v621 = vld [vmem:[#allocation2 + $0xb5] sm:$0xff]
      %v622 = vlaneseq
      %v623 = vshrl.u32 %v622, 7
      %v624 = vadd.s32 %v623, 8
      %v625 = vand.u32 %v623, 1
      %v626 = vand.u32 %v624, 1
      %vm627 = vcmp.eq.s32.totalorder %v625, 0
      %vm628 = vcmp.eq.s32.totalorder %v626, 0
      %v629 = vsel %vm627, %v606, %v590
      %v630 = vsel %vm628, %v607, %v591
      %v631 = vsel %vm627, %v608, %v592
      %v632 = vsel %vm628, %v609, %v593
      %v633 = vsel %vm627, %v610, %v594
      %v634 = vsel %vm628, %v611, %v595
      %v635 = vsel %vm627, %v612, %v596
      %v636 = vsel %vm628, %v613, %v597
      %v637 = vsel %vm627, %v614, %v598
      %v638 = vsel %vm628, %v615, %v599
      %v639 = vsel %vm627, %v616, %v600
      %v640 = vsel %vm628, %v617, %v601
      %v641 = vsel %vm627, %v618, %v602
      %v642 = vsel %vm628, %v619, %v603
      %v643 = vsel %vm627, %v620, %v604
      %v644 = vsel %vm628, %v621, %v605
      %v645 = vadd.f32 %v496, %v629
      %v646 = vadd.f32 %v501, %v630
      %v647 = vadd.f32 %v506, %v631
      %v648 = vadd.f32 %v511, %v632
      %v649 = vadd.f32 %v516, %v633
      %v650 = vadd.f32 %v521, %v634
      %v651 = vadd.f32 %v526, %v635
      %v652 = vadd.f32 %v531, %v636
      %v653 = vadd.f32 %v536, %v637
      %v654 = vadd.f32 %v541, %v638
      %v655 = vadd.f32 %v546, %v639
      %v656 = vadd.f32 %v551, %v640
      %v657 = vadd.f32 %v556, %v641
      %v658 = vadd.f32 %v561, %v642
      %v659 = vadd.f32 %v566, %v643
      %v660 = vadd.f32 %v571, %v644
      %v661 = vld [vmem:[%s2] sm:$0x1]
      %v663 = vlaneseq
      %v664 = vshrl.u32 %v663, 7
      %v665 = vsub.s32 0, %v664
      %v666 = vrot.slane %v661, %v665
      %v668 = vadd.f32 %v645, %v666
      %v669 = vadd.f32 %v646, %v666
      %v670 = vadd.f32 %v647, %v666
      %v671 = vadd.f32 %v648, %v666
      %v672 = vadd.f32 %v649, %v666
      %v673 = vadd.f32 %v650, %v666
      %v674 = vadd.f32 %v651, %v666
      %v675 = vadd.f32 %v652, %v666
      %v676 = vadd.f32 %v653, %v666
      %v677 = vadd.f32 %v654, %v666
      %v678 = vadd.f32 %v655, %v666
      %v679 = vadd.f32 %v656, %v666
      %v680 = vadd.f32 %v657, %v666
      %v681 = vadd.f32 %v658, %v666
      %v682 = vadd.f32 %v659, %v666
      %v683 = vadd.f32 %v660, %v666
      %684 = vst [vmem:[#allocation2 + $0x4] sm:$0xff] %v668
      %685 = vst [vmem:[#allocation2 + $0xc] sm:$0xff] %v669
      %686 = vst [vmem:[#allocation2 + $0x1c] sm:$0xff] %v670
      %687 = vst [vmem:[#allocation2 + $0x24] sm:$0xff] %v671
      %688 = vst [vmem:[#allocation2 + $0x34] sm:$0xff] %v672
      %689 = vst [vmem:[#allocation2 + $0x3c] sm:$0xff] %v673
      %690 = vst [vmem:[#allocation2 + $0x4c] sm:$0xff] %v674
      %691 = vst [vmem:[#allocation2 + $0x54] sm:$0xff] %v675
      %692 = vst [vmem:[#allocation2 + $0x64] sm:$0xff] %v676
      %693 = vst [vmem:[#allocation2 + $0x6c] sm:$0xff] %v677
      %694 = vst [vmem:[#allocation2 + $0x7c] sm:$0xff] %v678
      %695 = vst [vmem:[#allocation2 + $0x84] sm:$0xff] %v679
      %696 = vst [vmem:[#allocation2 + $0x94] sm:$0xff] %v680
      %697 = vst [vmem:[#allocation2 + $0x9c] sm:$0xff] %v681
      %698 = vst [vmem:[#allocation2 + $0xac] sm:$0xff] %v682
      %699 = vst [vmem:[#allocation2 + $0xb4] sm:$0xff] %v683
      %v700 = vld [vmem:[%s3 + $0x2] sm:$0x1]
      %v701 = vlaneseq
      %v702 = vshrl.u32 %v701, 7
      %v703 = vsub.s32 0, %v702
      %v704 = vrot.slane %v700, %v703
      %v705 = vmul.f32 %v668, %v704
      %v706 = vmul.f32 %v669, %v704
      %v707 = vmul.f32 %v670, %v704
      %v708 = vmul.f32 %v671, %v704
      %v709 = vmul.f32 %v672, %v704
      %v710 = vmul.f32 %v673, %v704
      %v711 = vmul.f32 %v674, %v704
      %v712 = vmul.f32 %v675, %v704
      %v713 = vmul.f32 %v676, %v704
      %v714 = vmul.f32 %v677, %v704
      %v715 = vmul.f32 %v678, %v704
      %v716 = vmul.f32 %v679, %v704
      %v717 = vmul.f32 %v680, %v704
      %v718 = vmul.f32 %v681, %v704
      %v719 = vmul.f32 %v682, %v704
      %v720 = vmul.f32 %v683, %v704
      %v721 = vld [vmem:[%s4] sm:$0x1]
      %v723 = vlaneseq
      %v724 = vshrl.u32 %v723, 7
      %v725 = vsub.s32 0, %v724
      %v726 = vrot.slane %v721, %v725
      %v728 = vadd.f32 %v705, %v726
      %v729 = vadd.f32 %v706, %v726
      %v730 = vadd.f32 %v707, %v726
      %v731 = vadd.f32 %v708, %v726
      %v732 = vadd.f32 %v709, %v726
      %v733 = vadd.f32 %v710, %v726
      %v734 = vadd.f32 %v711, %v726
      %v735 = vadd.f32 %v712, %v726
      %v736 = vadd.f32 %v713, %v726
      %v737 = vadd.f32 %v714, %v726
      %v738 = vadd.f32 %v715, %v726
      %v739 = vadd.f32 %v716, %v726
      %v740 = vadd.f32 %v717, %v726
      %v741 = vadd.f32 %v718, %v726
      %v742 = vadd.f32 %v719, %v726
      %v743 = vadd.f32 %v720, %v726
      %v744 = vld [vmem:[#allocation2] sm:$0xff]
      %v745 = vld [vmem:[#allocation2 + $0x8] sm:$0xff]
      %v746 = vld [vmem:[#allocation2 + $0x18] sm:$0xff]
      %v747 = vld [vmem:[#allocation2 + $0x20] sm:$0xff]
      %v748 = vld [vmem:[#allocation2 + $0x30] sm:$0xff]
      %v749 = vld [vmem:[#allocation2 + $0x38] sm:$0xff]
      %v750 = vld [vmem:[#allocation2 + $0x48] sm:$0xff]
      %v751 = vld [vmem:[#allocation2 + $0x50] sm:$0xff]
      %v752 = vld [vmem:[#allocation2 + $0x60] sm:$0xff]
      %v753 = vld [vmem:[#allocation2 + $0x68] sm:$0xff]
      %v754 = vld [vmem:[#allocation2 + $0x78] sm:$0xff]
      %v755 = vld [vmem:[#allocation2 + $0x80] sm:$0xff]
      %v756 = vld [vmem:[#allocation2 + $0x90] sm:$0xff]
      %v757 = vld [vmem:[#allocation2 + $0x98] sm:$0xff]
      %v758 = vld [vmem:[#allocation2 + $0xa8] sm:$0xff]
      %v759 = vld [vmem:[#allocation2 + $0xb0] sm:$0xff]
      %v760 = vld [vmem:[%s3] sm:$0x1]
      %v761 = vlaneseq
      %v762 = vshrl.u32 %v761, 7
      %v763 = vsub.s32 0, %v762
      %v764 = vrot.slane %v760, %v763
      %v765 = vmul.f32 %v744, %v764
      %v766 = vmul.f32 %v745, %v764
      %v767 = vmul.f32 %v746, %v764
      %v768 = vmul.f32 %v747, %v764
      %v769 = vmul.f32 %v748, %v764
      %v770 = vmul.f32 %v749, %v764
      %v771 = vmul.f32 %v750, %v764
      %v772 = vmul.f32 %v751, %v764
      %v773 = vmul.f32 %v752, %v764
      %v774 = vmul.f32 %v753, %v764
      %v775 = vmul.f32 %v754, %v764
      %v776 = vmul.f32 %v755, %v764
      %v777 = vmul.f32 %v756, %v764
      %v778 = vmul.f32 %v757, %v764
      %v779 = vmul.f32 %v758, %v764
      %v780 = vmul.f32 %v759, %v764
      %v781 = vadd.f32 %v728, %v765
      %v782 = vadd.f32 %v729, %v766
      %v783 = vadd.f32 %v730, %v767
      %v784 = vadd.f32 %v731, %v768
      %v785 = vadd.f32 %v732, %v769
      %v786 = vadd.f32 %v733, %v770
      %v787 = vadd.f32 %v734, %v771
      %v788 = vadd.f32 %v735, %v772
      %v789 = vadd.f32 %v736, %v773
      %v790 = vadd.f32 %v737, %v774
      %v791 = vadd.f32 %v738, %v775
      %v792 = vadd.f32 %v739, %v776
      %v793 = vadd.f32 %v740, %v777
      %v794 = vadd.f32 %v741, %v778
      %v795 = vadd.f32 %v742, %v779
      %v796 = vadd.f32 %v743, %v780
      %v797 = vld [vmem:[#allocation2 + $0x2] sm:$0xff]
      %v798 = vld [vmem:[#allocation2 + $0xa] sm:$0xff]
      %v799 = vld [vmem:[#allocation2 + $0x1a] sm:$0xff]
      %v800 = vld [vmem:[#allocation2 + $0x22] sm:$0xff]
      %v801 = vld [vmem:[#allocation2 + $0x32] sm:$0xff]
      %v802 = vld [vmem:[#allocation2 + $0x3a] sm:$0xff]
      %v803 = vld [vmem:[#allocation2 + $0x4a] sm:$0xff]
      %v804 = vld [vmem:[#allocation2 + $0x52] sm:$0xff]
      %v805 = vld [vmem:[#allocation2 + $0x62] sm:$0xff]
      %v806 = vld [vmem:[#allocation2 + $0x6a] sm:$0xff]
      %v807 = vld [vmem:[#allocation2 + $0x7a] sm:$0xff]
      %v808 = vld [vmem:[#allocation2 + $0x82] sm:$0xff]
      %v809 = vld [vmem:[#allocation2 + $0x92] sm:$0xff]
      %v810 = vld [vmem:[#allocation2 + $0x9a] sm:$0xff]
      %v811 = vld [vmem:[#allocation2 + $0xaa] sm:$0xff]
      %v812 = vld [vmem:[#allocation2 + $0xb2] sm:$0xff]
      %v813 = vld [vmem:[%s3 + $0x1] sm:$0x1]
      %v814 = vlaneseq
      %v815 = vshrl.u32 %v814, 7
      %v816 = vsub.s32 0, %v815
      %v817 = vrot.slane %v813, %v816
      %v818 = vmul.f32 %v797, %v817
      %v819 = vmul.f32 %v798, %v817
      %v820 = vmul.f32 %v799, %v817
      %v821 = vmul.f32 %v800, %v817
      %v822 = vmul.f32 %v801, %v817
      %v823 = vmul.f32 %v802, %v817
      %v824 = vmul.f32 %v803, %v817
      %v825 = vmul.f32 %v804, %v817
      %v826 = vmul.f32 %v805, %v817
      %v827 = vmul.f32 %v806, %v817
      %v828 = vmul.f32 %v807, %v817
      %v829 = vmul.f32 %v808, %v817
      %v830 = vmul.f32 %v809, %v817
      %v831 = vmul.f32 %v810, %v817
      %v832 = vmul.f32 %v811, %v817
      %v833 = vmul.f32 %v812, %v817
      %v834 = vadd.f32 %v781, %v818
      %v835 = vadd.f32 %v782, %v819
      %v836 = vadd.f32 %v783, %v820
      %v837 = vadd.f32 %v784, %v821
      %v838 = vadd.f32 %v785, %v822
      %v839 = vadd.f32 %v786, %v823
      %v840 = vadd.f32 %v787, %v824
      %v841 = vadd.f32 %v788, %v825
      %v842 = vadd.f32 %v789, %v826
      %v843 = vadd.f32 %v790, %v827
      %v844 = vadd.f32 %v791, %v828
      %v845 = vadd.f32 %v792, %v829
      %v846 = vadd.f32 %v793, %v830
      %v847 = vadd.f32 %v794, %v831
      %v848 = vadd.f32 %v795, %v832
      %v849 = vadd.f32 %v796, %v833
      %v850 = vld [vmem:[#allocation2 + $0x6] sm:$0xff]
      %v851 = vld [vmem:[#allocation2 + $0xe] sm:$0xff]
      %v852 = vld [vmem:[#allocation2 + $0x1e] sm:$0xff]
      %v853 = vld [vmem:[#allocation2 + $0x26] sm:$0xff]
      %v854 = vld [vmem:[#allocation2 + $0x36] sm:$0xff]
      %v855 = vld [vmem:[#allocation2 + $0x3e] sm:$0xff]
      %v856 = vld [vmem:[#allocation2 + $0x4e] sm:$0xff]
      %v857 = vld [vmem:[#allocation2 + $0x56] sm:$0xff]
      %v858 = vld [vmem:[#allocation2 + $0x66] sm:$0xff]
      %v859 = vld [vmem:[#allocation2 + $0x6e] sm:$0xff]
      %v860 = vld [vmem:[#allocation2 + $0x7e] sm:$0xff]
      %v861 = vld [vmem:[#allocation2 + $0x86] sm:$0xff]
      %v862 = vld [vmem:[#allocation2 + $0x96] sm:$0xff]
      %v863 = vld [vmem:[#allocation2 + $0x9e] sm:$0xff]
      %v864 = vld [vmem:[#allocation2 + $0xae] sm:$0xff]
      %v865 = vld [vmem:[#allocation2 + $0xb6] sm:$0xff]
      %v866 = vld [vmem:[%s3 + $0x3] sm:$0x1]
      %v867 = vlaneseq
      %v868 = vshrl.u32 %v867, 7
      %v869 = vsub.s32 0, %v868
      %v870 = vrot.slane %v866, %v869
      %v871 = vmul.f32 %v850, %v870
      %v872 = vmul.f32 %v851, %v870
      %v873 = vmul.f32 %v852, %v870
      %v874 = vmul.f32 %v853, %v870
      %v875 = vmul.f32 %v854, %v870
      %v876 = vmul.f32 %v855, %v870
      %v877 = vmul.f32 %v856, %v870
      %v878 = vmul.f32 %v857, %v870
      %v879 = vmul.f32 %v858, %v870
      %v880 = vmul.f32 %v859, %v870
      %v881 = vmul.f32 %v860, %v870
      %v882 = vmul.f32 %v861, %v870
      %v883 = vmul.f32 %v862, %v870
      %v884 = vmul.f32 %v863, %v870
      %v885 = vmul.f32 %v864, %v870
      %v886 = vmul.f32 %v865, %v870
      %v887 = vadd.f32 %v834, %v871
      %v888 = vadd.f32 %v835, %v872
      %v889 = vadd.f32 %v836, %v873
      %v890 = vadd.f32 %v837, %v874
      %v891 = vadd.f32 %v838, %v875
      %v892 = vadd.f32 %v839, %v876
      %v893 = vadd.f32 %v840, %v877
      %v894 = vadd.f32 %v841, %v878
      %v895 = vadd.f32 %v842, %v879
      %v896 = vadd.f32 %v843, %v880
      %v897 = vadd.f32 %v844, %v881
      %v898 = vadd.f32 %v845, %v882
      %v899 = vadd.f32 %v846, %v883
      %v900 = vadd.f32 %v847, %v884
      %v901 = vadd.f32 %v848, %v885
      %v902 = vadd.f32 %v849, %v886
      %v903 = vld [vmem:[#allocation2 + $0x8] sm:$0xff]
      %v904 = vld [vmem:[#allocation2 + $0x10] sm:$0xff]
      %v905 = vld [vmem:[#allocation2 + $0x20] sm:$0xff]
      %v906 = vld [vmem:[#allocation2 + $0x28] sm:$0xff]
      %v907 = vld [vmem:[#allocation2 + $0x38] sm:$0xff]
      %v908 = vld [vmem:[#allocation2 + $0x40] sm:$0xff]
      %v909 = vld [vmem:[#allocation2 + $0x50] sm:$0xff]
      %v910 = vld [vmem:[#allocation2 + $0x58] sm:$0xff]
      %v911 = vld [vmem:[#allocation2 + $0x68] sm:$0xff]
      %v912 = vld [vmem:[#allocation2 + $0x70] sm:$0xff]
      %v913 = vld [vmem:[#allocation2 + $0x80] sm:$0xff]
      %v914 = vld [vmem:[#allocation2 + $0x88] sm:$0xff]
      %v915 = vld [vmem:[#allocation2 + $0x98] sm:$0xff]
      %v916 = vld [vmem:[#allocation2 + $0xa0] sm:$0xff]
      %v917 = vld [vmem:[#allocation2 + $0xb0] sm:$0xff]
      %v918 = vld [vmem:[#allocation2 + $0xb8] sm:$0xff]
      %v919 = vld [vmem:[%s3 + $0x4] sm:$0x1]
      %v920 = vlaneseq
      %v921 = vshrl.u32 %v920, 7
      %v922 = vsub.s32 0, %v921
      %v923 = vrot.slane %v919, %v922
      %v924 = vmul.f32 %v903, %v923
      %v925 = vmul.f32 %v904, %v923
      %v926 = vmul.f32 %v905, %v923
      %v927 = vmul.f32 %v906, %v923
      %v928 = vmul.f32 %v907, %v923
      %v929 = vmul.f32 %v908, %v923
      %v930 = vmul.f32 %v909, %v923
      %v931 = vmul.f32 %v910, %v923
      %v932 = vmul.f32 %v911, %v923
      %v933 = vmul.f32 %v912, %v923
      %v934 = vmul.f32 %v913, %v923
      %v935 = vmul.f32 %v914, %v923
      %v936 = vmul.f32 %v915, %v923
      %v937 = vmul.f32 %v916, %v923
      %v938 = vmul.f32 %v917, %v923
      %v939 = vmul.f32 %v918, %v923
      %v940 = vadd.f32 %v887, %v924
      %v941 = vadd.f32 %v888, %v925
      %v942 = vadd.f32 %v889, %v926
      %v943 = vadd.f32 %v890, %v927
      %v944 = vadd.f32 %v891, %v928
      %v945 = vadd.f32 %v892, %v929
      %v946 = vadd.f32 %v893, %v930
      %v947 = vadd.f32 %v894, %v931
      %v948 = vadd.f32 %v895, %v932
      %v949 = vadd.f32 %v896, %v933
      %v950 = vadd.f32 %v897, %v934
      %v951 = vadd.f32 %v898, %v935
      %v952 = vadd.f32 %v899, %v936
      %v953 = vadd.f32 %v900, %v937
      %v954 = vadd.f32 %v901, %v938
      %v955 = vadd.f32 %v902, %v939
      %v956 = vld [vmem:[%s5] sm:$0x1]
      %v957 = vlaneseq
      %v958 = vshrl.u32 %v957, 7
      %v959 = vsub.s32 0, %v958
      %v960 = vrot.slane %v956, %v959
      %v961 = vmul.f32 %v960, 0.0
      %v962 = vmul.f32 %v940, %v960
      %v963 = vmul.f32 %v941, %v960
      %v964 = vmul.f32 %v942, %v960
      %v965 = vmul.f32 %v943, %v960
      %v966 = vmul.f32 %v944, %v960
      %v967 = vmul.f32 %v945, %v960
      %v968 = vmul.f32 %v946, %v960
      %v969 = vmul.f32 %v947, %v960
      %v970 = vmul.f32 %v948, %v960
      %v971 = vmul.f32 %v949, %v960
      %v972 = vmul.f32 %v950, %v960
      %v973 = vmul.f32 %v951, %v960
      %v974 = vld [vmem:[%s6] sm:$0x1]
      %v976 = vlaneseq
      %v977 = vshrl.u32 %v976, 7
      %v978 = vsub.s32 0, %v977
      %v979 = vrot.slane %v974, %v978
      %v981 = vadd.f32 %v961, %v979
      %v982 = vadd.f32 %v962, %v979
      %v983 = vadd.f32 %v963, %v979
      %v984 = vadd.f32 %v964, %v979
      %v985 = vadd.f32 %v965, %v979
      %v986 = vadd.f32 %v966, %v979
      %v987 = vadd.f32 %v967, %v979
      %v988 = vadd.f32 %v968, %v979
      %v989 = vadd.f32 %v969, %v979
      %v990 = vadd.f32 %v970, %v979
      %v991 = vadd.f32 %v971, %v979
      %v992 = vadd.f32 %v972, %v979
      %v993 = vadd.f32 %v973, %v979
      %v994 = vld [vmem:[%s5 + $0x1] sm:$0x1]
      %v995 = vlaneseq
      %v996 = vshrl.u32 %v995, 7
      %v997 = vsub.s32 0, %v996
      %v998 = vrot.slane %v994, %v997
      %v999 = vmul.f32 %v998, 0.0
      %v1000 = vmul.f32 %v940, %v998
      %v1001 = vmul.f32 %v941, %v998
      %v1002 = vmul.f32 %v942, %v998
      %v1003 = vmul.f32 %v943, %v998
      %v1004 = vmul.f32 %v944, %v998
      %v1005 = vmul.f32 %v945, %v998
      %v1006 = vmul.f32 %v946, %v998
      %v1007 = vmul.f32 %v947, %v998
      %v1008 = vmul.f32 %v948, %v998
      %v1009 = vmul.f32 %v949, %v998
      %v1010 = vmul.f32 %v950, %v998
      %v1011 = vmul.f32 %v951, %v998
      %v1012 = vmul.f32 %v952, %v998
      %v1013 = vmul.f32 %v953, %v998
      %v1014 = vadd.f32 %v981, %v999
      %v1015 = vadd.f32 %v981, %v1000
      %v1016 = vadd.f32 %v981, %v1001
      %v1017 = vadd.f32 %v982, %v1002
      %v1018 = vadd.f32 %v983, %v1003
      %v1019 = vadd.f32 %v984, %v1004
      %v1020 = vadd.f32 %v985, %v1005
      %v1021 = vadd.f32 %v986, %v1006
      %v1022 = vadd.f32 %v987, %v1007
      %v1023 = vadd.f32 %v988, %v1008
      %v1024 = vadd.f32 %v989, %v1009
      %v1025 = vadd.f32 %v990, %v1010
      %v1026 = vadd.f32 %v991, %v1011
      %v1027 = vadd.f32 %v992, %v1012
      %v1028 = vadd.f32 %v993, %v1013
      %v1029 = vld [vmem:[%s5 + $0x2] sm:$0x1]
      %v1030 = vlaneseq
      %v1031 = vshrl.u32 %v1030, 7
      %v1032 = vsub.s32 0, %v1031
      %v1033 = vrot.slane %v1029, %v1032
      %v1034 = vmul.f32 %v940, %v1033
      %v1035 = vmul.f32 %v941, %v1033
      %v1036 = vmul.f32 %v942, %v1033
      %v1037 = vmul.f32 %v943, %v1033
      %v1038 = vmul.f32 %v944, %v1033
      %v1039 = vmul.f32 %v945, %v1033
      %v1040 = vmul.f32 %v946, %v1033
      %v1041 = vmul.f32 %v947, %v1033
      %v1042 = vmul.f32 %v948, %v1033
      %v1043 = vmul.f32 %v949, %v1033
      %v1044 = vmul.f32 %v950, %v1033
      %v1045 = vmul.f32 %v951, %v1033
      %v1046 = vmul.f32 %v952, %v1033
      %v1047 = vmul.f32 %v953, %v1033
      %v1048 = vmul.f32 %v954, %v1033
      %v1049 = vmul.f32 %v955, %v1033
      %v1050 = vadd.f32 %v1014, %v1034
      %v1051 = vadd.f32 %v1014, %v1035
      %v1052 = vadd.f32 %v1015, %v1036
      %v1053 = vadd.f32 %v1016, %v1037
      %v1054 = vadd.f32 %v1017, %v1038
      %v1055 = vadd.f32 %v1018, %v1039
      %v1056 = vadd.f32 %v1019, %v1040
      %v1057 = vadd.f32 %v1020, %v1041
      %v1058 = vadd.f32 %v1021, %v1042
      %v1059 = vadd.f32 %v1022, %v1043
      %v1060 = vadd.f32 %v1023, %v1044
      %v1061 = vadd.f32 %v1024, %v1045
      %v1062 = vadd.f32 %v1025, %v1046
      %v1063 = vadd.f32 %v1026, %v1047
      %v1064 = vadd.f32 %v1027, %v1048
      %v1065 = vadd.f32 %v1028, %v1049
      %v1066 = vld [vmem:[%s5 + $0x3] sm:$0x1]
      %v1067 = vlaneseq
      %v1068 = vshrl.u32 %v1067, 7
      %v1069 = vsub.s32 0, %v1068
      %v1070 = vrot.slane %v1066, %v1069
      %v1071 = vmul.f32 %v942, %v1070
      %v1072 = vmul.f32 %v943, %v1070
      %v1073 = vmul.f32 %v944, %v1070
      %v1074 = vmul.f32 %v945, %v1070
      %v1075 = vmul.f32 %v946, %v1070
      %v1076 = vmul.f32 %v947, %v1070
      %v1077 = vmul.f32 %v948, %v1070
      %v1078 = vmul.f32 %v949, %v1070
      %v1079 = vmul.f32 %v950, %v1070
      %v1080 = vmul.f32 %v951, %v1070
      %v1081 = vmul.f32 %v952, %v1070
      %v1082 = vmul.f32 %v953, %v1070
      %v1083 = vmul.f32 %v954, %v1070
      %v1084 = vmul.f32 %v955, %v1070
      %v1085 = vmul.f32 %v1070, 0.0
      %v1086 = vadd.f32 %v1050, %v1071
      %v1087 = vadd.f32 %v1051, %v1072
      %v1088 = vadd.f32 %v1052, %v1073
      %v1089 = vadd.f32 %v1053, %v1074
      %v1090 = vadd.f32 %v1054, %v1075
      %v1091 = vadd.f32 %v1055, %v1076
      %v1092 = vadd.f32 %v1056, %v1077
      %v1093 = vadd.f32 %v1057, %v1078
      %v1094 = vadd.f32 %v1058, %v1079
      %v1095 = vadd.f32 %v1059, %v1080
      %v1096 = vadd.f32 %v1060, %v1081
      %v1097 = vadd.f32 %v1061, %v1082
      %v1098 = vadd.f32 %v1062, %v1083
      %v1099 = vadd.f32 %v1063, %v1084
      %v1100 = vadd.f32 %v1064, %v1085
      %v1101 = vadd.f32 %v1065, %v1085
      %v1102 = vld [vmem:[%s5 + $0x4] sm:$0x1]
      %v1103 = vlaneseq
      %v1104 = vshrl.u32 %v1103, 7
      %v1105 = vsub.s32 0, %v1104
      %v1106 = vrot.slane %v1102, %v1105
      %v1107 = vmul.f32 %v944, %v1106
      %v1108 = vmul.f32 %v945, %v1106
      %v1109 = vmul.f32 %v946, %v1106
      %v1110 = vmul.f32 %v947, %v1106
      %v1111 = vmul.f32 %v948, %v1106
      %v1112 = vmul.f32 %v949, %v1106
      %v1113 = vmul.f32 %v950, %v1106
      %v1114 = vmul.f32 %v951, %v1106
      %v1115 = vmul.f32 %v952, %v1106
      %v1116 = vmul.f32 %v953, %v1106
      %v1117 = vmul.f32 %v954, %v1106
      %v1118 = vmul.f32 %v955, %v1106
      %v1119 = vmul.f32 %v1106, 0.0
      %v1120 = vadd.f32 %v1086, %v1107
      %v1121 = vadd.f32 %v1087, %v1108
      %v1122 = vadd.f32 %v1088, %v1109
      %v1123 = vadd.f32 %v1089, %v1110
      %v1124 = vadd.f32 %v1090, %v1111
      %v1125 = vadd.f32 %v1091, %v1112
      %v1126 = vadd.f32 %v1092, %v1113
      %v1127 = vadd.f32 %v1093, %v1114
      %v1128 = vadd.f32 %v1094, %v1115
      %v1129 = vadd.f32 %v1095, %v1116
      %v1130 = vadd.f32 %v1096, %v1117
      %v1131 = vadd.f32 %v1097, %v1118
      %v1132 = vadd.f32 %v1098, %v1119
      %v1133 = vadd.f32 %v1099, %v1119
      %v1134 = vadd.f32 %v1100, %v1119
      %v1135 = vadd.f32 %v1101, %v1119
      %v1136 = vsub.f32 0.0, %v1120
      %v1137 = vsub.f32 0.0, %v1121
      %v1138 = vsub.f32 0.0, %v1122
      %v1139 = vsub.f32 0.0, %v1123
      %v1140 = vsub.f32 0.0, %v1124
      %v1141 = vsub.f32 0.0, %v1125
      %v1142 = vsub.f32 0.0, %v1126
      %v1143 = vsub.f32 0.0, %v1127
      %v1144 = vsub.f32 0.0, %v1128
      %v1145 = vsub.f32 0.0, %v1129
      %v1146 = vsub.f32 0.0, %v1130
      %v1147 = vsub.f32 0.0, %v1131
      %v1148 = vsub.f32 0.0, %v1132
      %v1149 = vsub.f32 0.0, %v1133
      %v1150 = vsub.f32 0.0, %v1134
      %v1151 = vsub.f32 0.0, %v1135
      %v1152 = vmul.f32 %v1136, 1.442695
      %v1153 = vpow.pop %v1152
      %v1154 = vmul.f32 %v1137, 1.442695
      %v1155 = vpow.pop %v1154
      %v1156 = vmul.f32 %v1138, 1.442695
      %v1157 = vpow.pop %v1156
      %v1158 = vmul.f32 %v1139, 1.442695
      %v1159 = vpow.pop %v1158
      %v1160 = vmul.f32 %v1140, 1.442695
      %v1161 = vpow.pop %v1160
      %v1162 = vmul.f32 %v1141, 1.442695
      %v1163 = vpow.pop %v1162
      %v1164 = vmul.f32 %v1142, 1.442695
      %v1165 = vpow.pop %v1164
      %v1166 = vmul.f32 %v1143, 1.442695
      %v1167 = vpow.pop %v1166
      %v1168 = vmul.f32 %v1144, 1.442695
      %v1169 = vpow.pop %v1168
      %v1170 = vmul.f32 %v1145, 1.442695
      %v1171 = vpow.pop %v1170
      %v1172 = vmul.f32 %v1146, 1.442695
      %v1173 = vpow.pop %v1172
      %v1174 = vmul.f32 %v1147, 1.442695
      %v1175 = vpow.pop %v1174
      %v1176 = vmul.f32 %v1148, 1.442695
      %v1177 = vpow.pop %v1176
      %v1178 = vmul.f32 %v1149, 1.442695
      %v1179 = vpow.pop %v1178
      %v1180 = vmul.f32 %v1150, 1.442695
      %v1181 = vpow.pop %v1180
      %v1182 = vmul.f32 %v1151, 1.442695
      %v1183 = vpow.pop %v1182
      %v1184 = vadd.f32 %v1153, 1.0
      %v1185 = vadd.f32 %v1155, 1.0
      %v1186 = vadd.f32 %v1157, 1.0
      %v1187 = vadd.f32 %v1159, 1.0
      %v1188 = vadd.f32 %v1161, 1.0
      %v1189 = vadd.f32 %v1163, 1.0
      %v1190 = vadd.f32 %v1165, 1.0
      %v1191 = vadd.f32 %v1167, 1.0
      %v1192 = vadd.f32 %v1169, 1.0
      %v1193 = vadd.f32 %v1171, 1.0
      %v1194 = vadd.f32 %v1173, 1.0
      %v1195 = vadd.f32 %v1175, 1.0
      %v1196 = vadd.f32 %v1177, 1.0
      %v1197 = vadd.f32 %v1179, 1.0
      %v1198 = vadd.f32 %v1181, 1.0
      %v1199 = vadd.f32 %v1183, 1.0
      %v1200 = vrcp.pop %v1184
      %v1201 = vrcp.pop %v1185
      %v1202 = vrcp.pop %v1186
      %v1203 = vrcp.pop %v1187
      %v1204 = vrcp.pop %v1188
      %v1205 = vrcp.pop %v1189
      %v1206 = vrcp.pop %v1190
      %v1207 = vrcp.pop %v1191
      %v1208 = vrcp.pop %v1192
      %v1209 = vrcp.pop %v1193
      %v1210 = vrcp.pop %v1194
      %v1211 = vrcp.pop %v1195
      %v1212 = vrcp.pop %v1196
      %v1213 = vrcp.pop %v1197
      %v1214 = vrcp.pop %v1198
      %v1215 = vrcp.pop %v1199
      %v1216 = vpack.c.bf16 %v1201, %v1200
      %v1217 = vpack.c.bf16 %v1203, %v1202
      %v1218 = vpack.c.bf16 %v1205, %v1204
      %v1219 = vpack.c.bf16 %v1207, %v1206
      %v1220 = vpack.c.bf16 %v1209, %v1208
      %v1221 = vpack.c.bf16 %v1211, %v1210
      %v1222 = vpack.c.bf16 %v1213, %v1212
      %v1223 = vpack.c.bf16 %v1215, %v1214
      %v1232 = vunpack.c.l.b16 %v1216
      %v1233 = vunpack.c.h.b16 %v1216
      %v1234 = vunpack.c.l.b16 %v1217
      %v1235 = vunpack.c.h.b16 %v1217
      %v1236 = vunpack.c.l.b16 %v1218
      %v1237 = vunpack.c.h.b16 %v1218
      %v1238 = vunpack.c.l.b16 %v1219
      %v1239 = vunpack.c.h.b16 %v1219
      %v1240 = vunpack.c.l.b16 %v1220
      %v1241 = vunpack.c.h.b16 %v1220
      %v1242 = vunpack.c.l.b16 %v1221
      %v1243 = vunpack.c.h.b16 %v1221
      %v1244 = vunpack.c.l.b16 %v1222
      %v1245 = vunpack.c.h.b16 %v1222
      %v1246 = vunpack.c.l.b16 %v1223
      %v1247 = vunpack.c.h.b16 %v1223
      %v1248 = vpack.c.b16 %v1232, %v1232
      %v1249 = vpack.c.b16 %v1233, %v1233
      %v1250 = vpack.c.b16 %v1234, %v1234
      %v1251 = vpack.c.b16 %v1235, %v1235
      %v1252 = vpack.c.b16 %v1236, %v1236
      %v1253 = vpack.c.b16 %v1237, %v1237
      %v1254 = vpack.c.b16 %v1238, %v1238
      %v1255 = vpack.c.b16 %v1239, %v1239
      %v1256 = vpack.c.b16 %v1240, %v1240
      %v1257 = vpack.c.b16 %v1241, %v1241
      %v1258 = vpack.c.b16 %v1242, %v1242
      %v1259 = vpack.c.b16 %v1243, %v1243
      %v1260 = vpack.c.b16 %v1244, %v1244
      %v1261 = vpack.c.b16 %v1245, %v1245
      %v1262 = vpack.c.b16 %v1246, %v1246
      %v1263 = vpack.c.b16 %v1247, %v1247
      %1280 = vst [vmem:[%s278] sm:$0xf] %v1248
      %1281 = vst [vmem:[%s278 + $0x4] sm:$0xf] %v1249
      %1282 = vst [vmem:[%s278 + $0x8] sm:$0xf] %v1248
      %1283 = vst [vmem:[%s278 + $0xc] sm:$0xf] %v1249
      %1284 = vst [vmem:[%s278 + $0x10] sm:$0xf] %v1250
      %1285 = vst [vmem:[%s278 + $0x14] sm:$0xf] %v1251
      %1286 = vst [vmem:[%s278 + $0x18] sm:$0xf] %v1250
      %1287 = vst [vmem:[%s278 + $0x1c] sm:$0xf] %v1251
      %1288 = vst [vmem:[%s278 + $0x20] sm:$0xf] %v1252
      %1289 = vst [vmem:[%s278 + $0x24] sm:$0xf] %v1253
      %1290 = vst [vmem:[%s278 + $0x28] sm:$0xf] %v1252
      %1291 = vst [vmem:[%s278 + $0x2c] sm:$0xf] %v1253
      %1292 = vst [vmem:[%s278 + $0x30] sm:$0xf] %v1254
      %1293 = vst [vmem:[%s278 + $0x34] sm:$0xf] %v1255
      %1294 = vst [vmem:[%s278 + $0x38] sm:$0xf] %v1254
      %1295 = vst [vmem:[%s278 + $0x3c] sm:$0xf] %v1255
      %1296 = vst [vmem:[%s278 + $0x40] sm:$0xf] %v1256
      %1297 = vst [vmem:[%s278 + $0x44] sm:$0xf] %v1257
      %1298 = vst [vmem:[%s278 + $0x48] sm:$0xf] %v1256
      %1299 = vst [vmem:[%s278 + $0x4c] sm:$0xf] %v1257
      %1300 = vst [vmem:[%s278 + $0x50] sm:$0xf] %v1258
      %1301 = vst [vmem:[%s278 + $0x54] sm:$0xf] %v1259
      %1302 = vst [vmem:[%s278 + $0x58] sm:$0xf] %v1258
      %1303 = vst [vmem:[%s278 + $0x5c] sm:$0xf] %v1259
      %1304 = vst [vmem:[%s278 + $0x60] sm:$0xf] %v1260
      %1305 = vst [vmem:[%s278 + $0x64] sm:$0xf] %v1261
      %1306 = vst [vmem:[%s278 + $0x68] sm:$0xf] %v1260
      %1307 = vst [vmem:[%s278 + $0x6c] sm:$0xf] %v1261
      %1308 = vst [vmem:[%s278 + $0x70] sm:$0xf] %v1262
      %1309 = vst [vmem:[%s278 + $0x74] sm:$0xf] %v1263
      %1310 = vst [vmem:[%s278 + $0x78] sm:$0xf] %v1262
      %1311 = vst [vmem:[%s278 + $0x7c] sm:$0xf] %v1263
      %p1312 = scmp.lt.s32.totalorder %s18, 1
      %s1313 = scalar_select %p1312, %s18, 1
      %s1314 = smul.addr %s1313, 32
      %s1315 = smul.addr %s1314, 4
      %s1316 = scalar_lea.vmem %s7, %s1315
      // Predicated region
      $region49: #{fca_forward.1} parent=47 // pred_check
        %p1317 = pneg %p188
      $region50: #{fca_forward.1} parent=47 // pred_check_branch
        %1319 = sbr.rel (%p1317) target = $region52
      $region51: #{fca_forward.1} parent=47 // pred_region
        _
      $region52: #{fca_forward.1} parent=47 // pred_fallthru
        _
    $region48: #{fca_forward.1} parent=5 // pred_fallthru
      _
    %p1320 = scmp.le.s32.totalorder 2, %s13
    // Predicated region
    $region53: #{fca_forward.1} parent=5 // pred_check
      %p1321 = pneg %p1320
    $region54: #{fca_forward.1} parent=5 // pred_check_branch
      %1323 = sbr.rel (%p1321) target = $region56
    $region55: #{fca_forward.1} parent=5 // pred_region
      %s1324 = ssub.s32 %s13, 2
      // Predicated region
      $region57: #{fca_forward.1} parent=55 // pred_check
        %p1325 = pneg %p194
      $region58: #{fca_forward.1} parent=55 // pred_check_branch
        %1327 = sbr.rel (%p1325) target = $region60
      $region59: #{fca_forward.1} parent=55 // pred_region
        %p1328 = scmp.lt.s32.totalorder %s19, 1
        %s1329 = scalar_select %p1328, %s19, 1
        %s1330 = smul.addr %s1329, 32
        %s1331 = smul.addr %s1330, 4
        %s1332 = scalar_lea.vmem %s7, %s1331
      $region60: #{fca_forward.1} parent=55 // pred_fallthru
        _
    $region56: #{fca_forward.1} parent=5 // pred_fallthru
      _
  $region6: #{fca_forward.1} parent=0 // loop_footer
    %s17 = sadd.s32 1, %s13
  $region7: #{fca_forward.1} parent=0 // loop_footer_branch
    %12 = sbr.rel target = $region3
  $region8: #{fca_forward.1} parent=0 // loop_exit
    _

</llo_original>
